<compile_context>
chip_gen: v7x
topology: tpu7x:2x2x1
jax: 0.10.0
libtpu: 0.0.40
codegen_flags: <defaults>
</compile_context>

<pallas_src>
import numpy as np
import jax
import jax.numpy as jnp
from jax.experimental import pallas as pl
from jax.experimental.pallas import tpu as pltpu


def _mel_db_kernel(frames_ref, basis_ref, mel_ref, out_ref):
    # frames_ref: (TILE_M, n_fft)   basis_ref: (n_fft, 2*F_pad)
    # mel_ref:    (F_pad, n_mels)   out_ref:   (TILE_M, n_mels)
    f_pad = mel_ref.shape[0]
    cs = jnp.dot(frames_ref[...], basis_ref[...],
                 preferred_element_type=jnp.float32)          # (TILE_M, 2*F_pad)
    re = cs[:, :f_pad]
    im = cs[:, f_pad:]
    power = re * re + im * im                                 # |STFT|^2, padded bins are 0
    mel = jnp.dot(power, mel_ref[...],
                  preferred_element_type=jnp.float32)         # (TILE_M, n_mels)
    # torchaudio.AmplitudeToDB defaults: stype="power", top_db=None, ref=1.0, amin=1e-10
    out_ref[...] = 10.0 * jnp.log10(jnp.maximum(mel, 1e-10))


def _hann_window(n_fft):
    n = np.arange(n_fft)
    return 0.5 * (1.0 - np.cos(2.0 * np.pi * n / n_fft))      # periodic hann (torch default)


def _round_up(x, m):
    return -(-x // m) * m


def _dft_basis(n_fft, f_pad):
    """Windowed cos/sin DFT bases, concatenated, freq axis zero-padded to f_pad."""
    n_freqs = n_fft // 2 + 1
    n = np.arange(n_fft)[:, None]
    k = np.arange(n_freqs)[None, :]
    ang = 2.0 * np.pi * n * k / n_fft
    win = _hann_window(n_fft)[:, None]
    cosw = np.zeros((n_fft, f_pad), dtype=np.float32)
    sinw = np.zeros((n_fft, f_pad), dtype=np.float32)
    cosw[:, :n_freqs] = np.cos(ang) * win
    sinw[:, :n_freqs] = np.sin(ang) * win
    return np.concatenate([cosw, sinw], axis=1)                # (n_fft, 2*f_pad)


def _mel_filterbank(sample_rate, n_fft, n_mels, f_pad):
    # torchaudio.functional.melscale_fbanks, mel_scale="htk", norm=None,
    # f_min=0, f_max=sample_rate/2 (MelSpectrogram defaults).
    # Zero-padded with extra frequency ROWS so padded bins contribute nothing.
    n_freqs = n_fft // 2 + 1
    all_freqs = np.linspace(0.0, sample_rate / 2.0, n_freqs)

    def hz_to_mel(f):
        return 2595.0 * np.log10(1.0 + f / 700.0)

    def mel_to_hz(m):
        return 700.0 * (10.0 ** (m / 2595.0) - 1.0)

    m_pts = np.linspace(hz_to_mel(0.0), hz_to_mel(sample_rate / 2.0), n_mels + 2)
    f_pts = mel_to_hz(m_pts)
    f_diff = f_pts[1:] - f_pts[:-1]
    slopes = f_pts[None, :] - all_freqs[:, None]
    down = -slopes[:, :-2] / f_diff[:-1]
    up = slopes[:, 2:] / f_diff[1:]
    fb = np.maximum(0.0, np.minimum(down, up)).astype(np.float32)   # (n_freqs, n_mels)
    fb_pad = np.zeros((f_pad, n_mels), dtype=np.float32)
    fb_pad[:n_freqs, :] = fb
    return fb_pad


def mel_spectrogram_db(x, sample_rate=8000, n_fft=256, n_mels=128, tile_m=256):
    """x: (..., channel, time) float32 -> (..., channel, n_mels, n_frames) float32."""
    x = x.astype(jnp.float32)
    hop = n_fft // 2                 # torchaudio default: hop_length = win_length // 2
    pad = n_fft // 2                 # center=True
    n_freqs = n_fft // 2 + 1
    f_pad = _round_up(n_freqs, 128)  # lane-aligned frequency axis
    lead = x.shape[:-1]
    T = x.shape[-1]
    n_frames = 1 + T // hop          # center=True frame count

    xf = x.reshape((-1, T))
    BC = xf.shape[0]
    # center=True with reflect padding (torch.stft default pad_mode in MelSpectrogram)
    xp = jnp.pad(xf, ((0, 0), (pad, pad)), mode="reflect")     # (BC, T + n_fft)

    # Gather-free framing: hop = n_fft/2, so frame i = [chunk_i, chunk_{i+1}]
    chunks = xp[:, :(n_frames + 1) * hop].reshape(BC, n_frames + 1, hop)
    frames = jnp.concatenate([chunks[:, :-1, :], chunks[:, 1:, :]], axis=-1)
    frames = frames.reshape(BC * n_frames, n_fft)              # (M, n_fft)

    # Flatten + pad M so every grid step feeds the MXU a full TILE_M rows.
    M = BC * n_frames
    m_pad = _round_up(M, tile_m)
    if m_pad != M:
        frames = jnp.pad(frames, ((0, m_pad - M), (0, 0)))

    basis = jnp.asarray(_dft_basis(n_fft, f_pad))                       # (n_fft, 2*f_pad)
    mel_fb = jnp.asarray(_mel_filterbank(sample_rate, n_fft, n_mels, f_pad))  # (f_pad, n_mels)

    out = pl.pallas_call(
        _mel_db_kernel,
        out_shape=jax.ShapeDtypeStruct((m_pad, n_mels), jnp.float32),
        grid=(m_pad // tile_m,),
        in_specs=[
            pl.BlockSpec((tile_m, n_fft), lambda i: (i, 0)),
            pl.BlockSpec((n_fft, 2 * f_pad), lambda i: (0, 0)),
            pl.BlockSpec((f_pad, n_mels), lambda i: (0, 0)),
        ],
        out_specs=pl.BlockSpec((tile_m, n_mels), lambda i: (i, 0)),
        compiler_params=pltpu.CompilerParams(
            dimension_semantics=("parallel",),
            vmem_limit_bytes=64 * 1024 * 1024,
        ),
    )(frames, basis, mel_fb)

    out = out[:M].reshape(lead + (n_frames, n_mels))
    # torchaudio MelSpectrogram output convention: (..., channel, n_mels, n_frames)
    return jnp.swapaxes(out, -1, -2)


if __name__ == "__main__":
    key = jax.random.PRNGKey(0)
    # Small shapes consistent with the module: (..., channel, time).
    # (Module defaults are sr=44100, n_fft=2048, n_mels=128; scaled down here.)
    B, C, T = 2, 2, 2048
    sample_rate, n_fft, n_mels = 8000, 256, 128
    x = jax.random.normal(key, (B, C, T), dtype=jnp.float32)

    y = mel_spectrogram_db(x, sample_rate=sample_rate, n_fft=n_fft, n_mels=n_mels)
    y = jax.block_until_ready(y)

    n_frames = 1 + T // (n_fft // 2)
    assert y.shape == (B, C, n_mels, n_frames), y.shape
    assert y.dtype == jnp.float32
    assert bool(jnp.all(jnp.isfinite(y)))
    print("KERNEL_OK")
</pallas_src>

<mosaic_0001>
module attributes {stable_mosaic.version = 11 : i64} {
  func.func @_mel_db_kernel(%arg0: i32, %arg1: memref<256x256xf32, #tpu.memory_space<vmem>>, %arg2: memref<256x512xf32, #tpu.memory_space<vmem>>, %arg3: memref<256x128xf32, #tpu.memory_space<vmem>>, %arg4: memref<256x128xf32, #tpu.memory_space<vmem>>) attributes {dimension_semantics = [#tpu.dimension_semantics<parallel>], iteration_bounds = array<i64: 1>, scalar_prefetch = 0 : i64, scratch_operands = 0 : i64, tpu.core_type = #tpu.core_type<tc>, window_params = [{transform_indices = @transform_0, window_bounds = array<i64: 256, 256>}, {pipeline_mode = #tpu.pipeline_mode<synchronous>, transform_indices = @transform_1, window_bounds = array<i64: 256, 512>}, {pipeline_mode = #tpu.pipeline_mode<synchronous>, transform_indices = @transform_2, window_bounds = array<i64: 256, 128>}, {transform_indices = @transform_3, window_bounds = array<i64: 256, 128>}]} {
    %c0 = arith.constant 0 : index
    %c0_0 = arith.constant 0 : index
    %0 = vector.load %arg1[%c0, %c0_0] : memref<256x256xf32, #tpu.memory_space<vmem>>, vector<256x256xf32>
    %c0_1 = arith.constant 0 : index
    %c0_2 = arith.constant 0 : index
    %1 = vector.load %arg2[%c0_1, %c0_2] : memref<256x512xf32, #tpu.memory_space<vmem>>, vector<256x512xf32>
    %cst = arith.constant dense<0.000000e+00> : vector<256x512xf32>
    %2 = tpu.matmul %0, %1, %cst {dimension_numbers = #tpu.dot_dimension_numbers<[1], [0], [0], [1], [0, 0, 1, 1], [], []>} : vector<256x256xf32>, vector<256x512xf32>, vector<256x512xf32> -> vector<256x512xf32>
    %3 = vector.extract_strided_slice %2 {offsets = [0, 0], sizes = [256, 256], strides = [1, 1]} : vector<256x512xf32> to vector<256x256xf32>
    %4 = vector.extract_strided_slice %2 {offsets = [0, 256], sizes = [256, 256], strides = [1, 1]} : vector<256x512xf32> to vector<256x256xf32>
    %5 = arith.mulf %3, %3 : vector<256x256xf32>
    %6 = arith.mulf %4, %4 : vector<256x256xf32>
    %7 = arith.addf %5, %6 : vector<256x256xf32>
    %c0_3 = arith.constant 0 : index
    %c0_4 = arith.constant 0 : index
    %8 = vector.load %arg3[%c0_3, %c0_4] : memref<256x128xf32, #tpu.memory_space<vmem>>, vector<256x128xf32>
    %cst_5 = arith.constant dense<0.000000e+00> : vector<256x128xf32>
    %9 = tpu.matmul %7, %8, %cst_5 {dimension_numbers = #tpu.dot_dimension_numbers<[1], [0], [0], [1], [0, 0, 1, 1], [], []>} : vector<256x256xf32>, vector<256x128xf32>, vector<256x128xf32> -> vector<256x128xf32>
    %cst_6 = arith.constant 1.000000e-10 : f32
    %10 = vector.broadcast %cst_6 : f32 to vector<256x128xf32>
    %11 = arith.maximumf %9, %10 : vector<256x128xf32>
    %12 = math.log %11 : vector<256x128xf32>
    %cst_7 = arith.constant 0.434294492 : f32
    %13 = vector.broadcast %cst_7 : f32 to vector<256x128xf32>
    %14 = arith.mulf %12, %13 : vector<256x128xf32>
    %cst_8 = arith.constant 1.000000e+01 : f32
    %15 = vector.broadcast %cst_8 : f32 to vector<256x128xf32>
    %16 = arith.mulf %15, %14 : vector<256x128xf32>
    %c0_9 = arith.constant 0 : index
    %c0_10 = arith.constant 0 : index
    %17 = vector.load %arg4[%c0_9, %c0_10] : memref<256x128xf32, #tpu.memory_space<vmem>>, vector<256x128xf32>
    tpu.vector_store %arg4[%c0_9, %c0_10], %16 {strides = array<i32>} : memref<256x128xf32, #tpu.memory_space<vmem>>, vector<256x128xf32>,
    return
  }
  func.func @transform_0(%arg0: i32) -> (i32, i32) {
    %c0_i32 = arith.constant 0 : i32
    %c0_i32_0 = arith.constant 0 : i32
    return %arg0, %c0_i32 : i32, i32
  }
  func.func @transform_1(%arg0: i32) -> (i32, i32) {
    %c0_i32 = arith.constant 0 : i32
    %c0_i32_0 = arith.constant 0 : i32
    %c0_i32_1 = arith.constant 0 : i32
    return %c0_i32, %c0_i32_0 : i32, i32
  }
  func.func @transform_2(%arg0: i32) -> (i32, i32) {
    %c0_i32 = arith.constant 0 : i32
    %c0_i32_0 = arith.constant 0 : i32
    %c0_i32_1 = arith.constant 0 : i32
    return %c0_i32, %c0_i32_0 : i32, i32
  }
  func.func @transform_3(%arg0: i32) -> (i32, i32) {
    %c0_i32 = arith.constant 0 : i32
    %c0_i32_0 = arith.constant 0 : i32
    return %arg0, %c0_i32 : i32, i32
  }
}

</mosaic_0001>

<llo_original>
// kernel: tpu_custom_call.1
$region0: #{tpu_custom_call.1}
  #allocation0 [shape = 'u32[]', space=smem, size = 0x4, offset = 0x4, fixed_abs, tag = 'smem constant byte address 0x4 - core index']
  #allocation1 [shape = 'u32[144,128]{1,0:T(1,128)}', space=vmem, size = 0x12000, scoped, tag = 'internal scratch']
  %s0 = inlined_call_operand.hbm [shape: f32[256,256], index: 0, kind: input, shape index: {}]
  %s1 = inlined_call_operand.hbm [shape: f32[256,512], index: 1, kind: input, shape index: {}]
  %s2 = inlined_call_operand.hbm [shape: f32[256,128], index: 2, kind: input, shape index: {}]
  %s3 = inlined_call_operand.hbm [shape: f32[256,128], index: 3, kind: output, shape index: {}]
  %s4 = sld [smem:[#allocation0]]
  $region34: #{tpu_custom_call.1} parent=0
    _
  %s6 = ssub.s32 1, %s4
  %s7 = scalar_select 0, %s6, %s4
  $region1: #{tpu_custom_call.1} parent=0
    #allocation2 [shape = 'u8[262144]{0}', space=vmem, size = 0x40000, scoped, tag = 'input window, operand 0, single buffered']
    #allocation3 [shape = 's32[1]{0}', space=sflag, size = 0x4, scoped, tag = 'scoped memory for tpu_custom_call.1']
    #allocation4 [shape = 's32[1]{0}', space=sflag, size = 0x4, scoped, tag = 'scoped memory for tpu_custom_call.1']
    #allocation5 [shape = 'u8[524288]{0}', space=vmem, size = 0x80000, scoped, tag = 'input window, operand 1, single buffered']
    #allocation6 [shape = 's32[1]{0}', space=sflag, size = 0x4, scoped, tag = 'scoped memory for tpu_custom_call.1']
    #allocation7 [shape = 'u8[131072]{0}', space=vmem, size = 0x20000, scoped, tag = 'input window, operand 2, single buffered']
    #allocation8 [shape = 'u8[131072]{0}', space=vmem, size = 0x20000, scoped, tag = 'output window, operand 0, single buffered']
    %8 = vsyncpa [#allocation3], 0
    %9 = vsyncpa [#allocation6], 0
    %10 = vsyncpa [#allocation4], 0
    // Predicated region
    $region2: #{tpu_custom_call.1} parent=1 // pred_check
      _
    $region3: #{tpu_custom_call.1} parent=1 // pred_check_branch
      %12 = sbr.rel (0) target = $region5
    $region4: #{tpu_custom_call.1} parent=1 // pred_region
      %s14 = ssub.s32 8192, 8192
      %15 = vsyncadd [#allocation3], %s14
      %s16 = sshll.u32 [#allocation2], 4
      %s17 = int_to_ptr.vmem [resolvable:$true] %s16
      %22 = dma.hbm_to_vmem [thread:$0]  %s0, 8192, %s17, [#allocation3], 256, 256, 16
    $region5: #{tpu_custom_call.1} parent=1 // pred_fallthru
      _
    // Predicated region
    $region6: #{tpu_custom_call.1} parent=1 // pred_check
      _
    $region7: #{tpu_custom_call.1} parent=1 // pred_check_branch
      %24 = sbr.rel (0) target = $region9
    $region8: #{tpu_custom_call.1} parent=1 // pred_region
      %s26 = ssub.s32 16384, 16384
      %27 = vsyncadd [#allocation6], %s26
      %s28 = sshll.u32 [#allocation5], 4
      %s29 = int_to_ptr.vmem [resolvable:$true] %s28
      %34 = dma.hbm_to_vmem [thread:$0]  %s1, 16384, %s29, [#allocation6], 512, 512, 32
    $region9: #{tpu_custom_call.1} parent=1 // pred_fallthru
      _
    // Predicated region
    $region10: #{tpu_custom_call.1} parent=1 // pred_check
      _
    $region11: #{tpu_custom_call.1} parent=1 // pred_check_branch
      %36 = sbr.rel (0) target = $region13
    $region12: #{tpu_custom_call.1} parent=1 // pred_region
      %s38 = ssub.s32 4096, 4096
      %39 = vsyncadd [#allocation6], %s38
      %s40 = sshll.u32 [#allocation7], 4
      %s41 = int_to_ptr.vmem [resolvable:$true] %s40
      %46 = dma.hbm_to_vmem [thread:$0]  %s2, 4096, %s41, [#allocation6], 128, 128, 8
    $region13: #{tpu_custom_call.1} parent=1 // pred_fallthru
      _
    // Predicated region
    $region14: #{tpu_custom_call.1} parent=1 // pred_check
      _
    $region15: #{tpu_custom_call.1} parent=1 // pred_check_branch
      %48 = sbr.rel (0) target = $region17
    $region16: #{tpu_custom_call.1} parent=1 // pred_region
      %49 = dma.done [#allocation3], 8192
    $region17: #{tpu_custom_call.1} parent=1 // pred_fallthru
      _
    // Predicated region
    $region18: #{tpu_custom_call.1} parent=1 // pred_check
      _
    $region19: #{tpu_custom_call.1} parent=1 // pred_check_branch
      %51 = sbr.rel (0) target = $region21
    $region20: #{tpu_custom_call.1} parent=1 // pred_region
      %52 = dma.done [#allocation6], 16384
    $region21: #{tpu_custom_call.1} parent=1 // pred_fallthru
      _
    // Predicated region
    $region22: #{tpu_custom_call.1} parent=1 // pred_check
      _
    $region23: #{tpu_custom_call.1} parent=1 // pred_check_branch
      %54 = sbr.rel (0) target = $region25
    $region24: #{tpu_custom_call.1} parent=1 // pred_region
      %55 = dma.done [#allocation6], 4096
    $region25: #{tpu_custom_call.1} parent=1 // pred_fallthru
      _
    %v56 = vld [vmem:[#allocation2] sm:$0xff]
    %v57 = vld [vmem:[#allocation2 + $0x8] sm:$0xff]
    %v58 = vld [vmem:[#allocation2 + $0x10] sm:$0xff]
    %v59 = vld [vmem:[#allocation2 + $0x18] sm:$0xff]
    %v60 = vld [vmem:[#allocation2 + $0x20] sm:$0xff]
    %v61 = vld [vmem:[#allocation2 + $0x28] sm:$0xff]
    %v62 = vld [vmem:[#allocation2 + $0x30] sm:$0xff]
    %v63 = vld [vmem:[#allocation2 + $0x38] sm:$0xff]
    %v64 = vld [vmem:[#allocation2 + $0x40] sm:$0xff]
    %v65 = vld [vmem:[#allocation2 + $0x48] sm:$0xff]
    %v66 = vld [vmem:[#allocation2 + $0x50] sm:$0xff]
    %v67 = vld [vmem:[#allocation2 + $0x58] sm:$0xff]
    %v68 = vld [vmem:[#allocation2 + $0x60] sm:$0xff]
    %v69 = vld [vmem:[#allocation2 + $0x68] sm:$0xff]
    %v70 = vld [vmem:[#allocation2 + $0x70] sm:$0xff]
    %v71 = vld [vmem:[#allocation2 + $0x78] sm:$0xff]
    %v72 = vld [vmem:[#allocation2 + $0x80] sm:$0xff]
    %v73 = vld [vmem:[#allocation2 + $0x88] sm:$0xff]
    %v74 = vld [vmem:[#allocation2 + $0x90] sm:$0xff]
    %v75 = vld [vmem:[#allocation2 + $0x98] sm:$0xff]
    %v76 = vld [vmem:[#allocation2 + $0xa0] sm:$0xff]
    %v77 = vld [vmem:[#allocation2 + $0xa8] sm:$0xff]
    %v78 = vld [vmem:[#allocation2 + $0xb0] sm:$0xff]
    %v79 = vld [vmem:[#allocation2 + $0xb8] sm:$0xff]
    %v80 = vld [vmem:[#allocation2 + $0xc0] sm:$0xff]
    %v81 = vld [vmem:[#allocation2 + $0xc8] sm:$0xff]
    %v82 = vld [vmem:[#allocation2 + $0xd0] sm:$0xff]
    %v83 = vld [vmem:[#allocation2 + $0xd8] sm:$0xff]
    %v84 = vld [vmem:[#allocation2 + $0xe0] sm:$0xff]
    %v85 = vld [vmem:[#allocation2 + $0xe8] sm:$0xff]
    %v86 = vld [vmem:[#allocation2 + $0xf0] sm:$0xff]
    %v87 = vld [vmem:[#allocation2 + $0xf8] sm:$0xff]
    %v88 = vld [vmem:[#allocation2 + $0x100] sm:$0xff]
    %v89 = vld [vmem:[#allocation2 + $0x108] sm:$0xff]
    %v90 = vld [vmem:[#allocation2 + $0x110] sm:$0xff]
    %v91 = vld [vmem:[#allocation2 + $0x118] sm:$0xff]
    %v92 = vld [vmem:[#allocation2 + $0x120] sm:$0xff]
    %v93 = vld [vmem:[#allocation2 + $0x128] sm:$0xff]
    %v94 = vld [vmem:[#allocation2 + $0x130] sm:$0xff]
    %v95 = vld [vmem:[#allocation2 + $0x138] sm:$0xff]
    %v96 = vld [vmem:[#allocation2 + $0x140] sm:$0xff]
    %v97 = vld [vmem:[#allocation2 + $0x148] sm:$0xff]
    %v98 = vld [vmem:[#allocation2 + $0x150] sm:$0xff]
    %v99 = vld [vmem:[#allocation2 + $0x158] sm:$0xff]
    %v100 = vld [vmem:[#allocation2 + $0x160] sm:$0xff]
    %v101 = vld [vmem:[#allocation2 + $0x168] sm:$0xff]
    %v102 = vld [vmem:[#allocation2 + $0x170] sm:$0xff]
    %v103 = vld [vmem:[#allocation2 + $0x178] sm:$0xff]
    %v104 = vld [vmem:[#allocation2 + $0x180] sm:$0xff]
    %v105 = vld [vmem:[#allocation2 + $0x188] sm:$0xff]
    %v106 = vld [vmem:[#allocation2 + $0x190] sm:$0xff]
    %v107 = vld [vmem:[#allocation2 + $0x198] sm:$0xff]
    %v108 = vld [vmem:[#allocation2 + $0x1a0] sm:$0xff]
    %v109 = vld [vmem:[#allocation2 + $0x1a8] sm:$0xff]
    %v110 = vld [vmem:[#allocation2 + $0x1b0] sm:$0xff]
    %v111 = vld [vmem:[#allocation2 + $0x1b8] sm:$0xff]
    %v112 = vld [vmem:[#allocation2 + $0x1c0] sm:$0xff]
    %v113 = vld [vmem:[#allocation2 + $0x1c8] sm:$0xff]
    %v114 = vld [vmem:[#allocation2 + $0x1d0] sm:$0xff]
    %v115 = vld [vmem:[#allocation2 + $0x1d8] sm:$0xff]
    %v116 = vld [vmem:[#allocation2 + $0x1e0] sm:$0xff]
    %v117 = vld [vmem:[#allocation2 + $0x1e8] sm:$0xff]
    %v118 = vld [vmem:[#allocation2 + $0x1f0] sm:$0xff]
    %v119 = vld [vmem:[#allocation2 + $0x1f8] sm:$0xff]
    %v120 = vld [vmem:[#allocation5] sm:$0xff]
    %v121 = vld [vmem:[#allocation5 + $0x8] sm:$0xff]
    %v122 = vld [vmem:[#allocation5 + $0x10] sm:$0xff]
    %v123 = vld [vmem:[#allocation5 + $0x18] sm:$0xff]
    %v124 = vld [vmem:[#allocation5 + $0x20] sm:$0xff]
    %v125 = vld [vmem:[#allocation5 + $0x28] sm:$0xff]
    %v126 = vld [vmem:[#allocation5 + $0x30] sm:$0xff]
    %v127 = vld [vmem:[#allocation5 + $0x38] sm:$0xff]
    %v128 = vld [vmem:[#allocation5 + $0x40] sm:$0xff]
    %v129 = vld [vmem:[#allocation5 + $0x48] sm:$0xff]
    %v130 = vld [vmem:[#allocation5 + $0x50] sm:$0xff]
    %v131 = vld [vmem:[#allocation5 + $0x58] sm:$0xff]
    %v132 = vld [vmem:[#allocation5 + $0x60] sm:$0xff]
    %v133 = vld [vmem:[#allocation5 + $0x68] sm:$0xff]
    %v134 = vld [vmem:[#allocation5 + $0x70] sm:$0xff]
    %v135 = vld [vmem:[#allocation5 + $0x78] sm:$0xff]
    %v136 = vld [vmem:[#allocation5 + $0x80] sm:$0xff]
    %v137 = vld [vmem:[#allocation5 + $0x88] sm:$0xff]
    %v138 = vld [vmem:[#allocation5 + $0x90] sm:$0xff]
    %v139 = vld [vmem:[#allocation5 + $0x98] sm:$0xff]
    %v140 = vld [vmem:[#allocation5 + $0xa0] sm:$0xff]
    %v141 = vld [vmem:[#allocation5 + $0xa8] sm:$0xff]
    %v142 = vld [vmem:[#allocation5 + $0xb0] sm:$0xff]
    %v143 = vld [vmem:[#allocation5 + $0xb8] sm:$0xff]
    %v144 = vld [vmem:[#allocation5 + $0xc0] sm:$0xff]
    %v145 = vld [vmem:[#allocation5 + $0xc8] sm:$0xff]
    %v146 = vld [vmem:[#allocation5 + $0xd0] sm:$0xff]
    %v147 = vld [vmem:[#allocation5 + $0xd8] sm:$0xff]
    %v148 = vld [vmem:[#allocation5 + $0xe0] sm:$0xff]
    %v149 = vld [vmem:[#allocation5 + $0xe8] sm:$0xff]
    %v150 = vld [vmem:[#allocation5 + $0xf0] sm:$0xff]
    %v151 = vld [vmem:[#allocation5 + $0xf8] sm:$0xff]
    %v152 = vld [vmem:[#allocation5 + $0x100] sm:$0xff]
    %v153 = vld [vmem:[#allocation5 + $0x108] sm:$0xff]
    %v154 = vld [vmem:[#allocation5 + $0x110] sm:$0xff]
    %v155 = vld [vmem:[#allocation5 + $0x118] sm:$0xff]
    %v156 = vld [vmem:[#allocation5 + $0x120] sm:$0xff]
    %v157 = vld [vmem:[#allocation5 + $0x128] sm:$0xff]
    %v158 = vld [vmem:[#allocation5 + $0x130] sm:$0xff]
    %v159 = vld [vmem:[#allocation5 + $0x138] sm:$0xff]
    %v160 = vld [vmem:[#allocation5 + $0x140] sm:$0xff]
    %v161 = vld [vmem:[#allocation5 + $0x148] sm:$0xff]
    %v162 = vld [vmem:[#allocation5 + $0x150] sm:$0xff]
    %v163 = vld [vmem:[#allocation5 + $0x158] sm:$0xff]
    %v164 = vld [vmem:[#allocation5 + $0x160] sm:$0xff]
    %v165 = vld [vmem:[#allocation5 + $0x168] sm:$0xff]
    %v166 = vld [vmem:[#allocation5 + $0x170] sm:$0xff]
    %v167 = vld [vmem:[#allocation5 + $0x178] sm:$0xff]
    %v168 = vld [vmem:[#allocation5 + $0x180] sm:$0xff]
    %v169 = vld [vmem:[#allocation5 + $0x188] sm:$0xff]
    %v170 = vld [vmem:[#allocation5 + $0x190] sm:$0xff]
    %v171 = vld [vmem:[#allocation5 + $0x198] sm:$0xff]
    %v172 = vld [vmem:[#allocation5 + $0x1a0] sm:$0xff]
    %v173 = vld [vmem:[#allocation5 + $0x1a8] sm:$0xff]
    %v174 = vld [vmem:[#allocation5 + $0x1b0] sm:$0xff]
    %v175 = vld [vmem:[#allocation5 + $0x1b8] sm:$0xff]
    %v176 = vld [vmem:[#allocation5 + $0x1c0] sm:$0xff]
    %v177 = vld [vmem:[#allocation5 + $0x1c8] sm:$0xff]
    %v178 = vld [vmem:[#allocation5 + $0x1d0] sm:$0xff]
    %v179 = vld [vmem:[#allocation5 + $0x1d8] sm:$0xff]
    %v180 = vld [vmem:[#allocation5 + $0x1e0] sm:$0xff]
    %v181 = vld [vmem:[#allocation5 + $0x1e8] sm:$0xff]
    %v182 = vld [vmem:[#allocation5 + $0x1f0] sm:$0xff]
    %v183 = vld [vmem:[#allocation5 + $0x1f8] sm:$0xff]
    %v184 = vld [vmem:[#allocation5 + $0x200] sm:$0xff]
    %v185 = vld [vmem:[#allocation5 + $0x208] sm:$0xff]
    %v186 = vld [vmem:[#allocation5 + $0x210] sm:$0xff]
    %v187 = vld [vmem:[#allocation5 + $0x218] sm:$0xff]
    %v188 = vld [vmem:[#allocation5 + $0x220] sm:$0xff]
    %v189 = vld [vmem:[#allocation5 + $0x228] sm:$0xff]
    %v190 = vld [vmem:[#allocation5 + $0x230] sm:$0xff]
    %v191 = vld [vmem:[#allocation5 + $0x238] sm:$0xff]
    %v192 = vld [vmem:[#allocation5 + $0x240] sm:$0xff]
    %v193 = vld [vmem:[#allocation5 + $0x248] sm:$0xff]
    %v194 = vld [vmem:[#allocation5 + $0x250] sm:$0xff]
    %v195 = vld [vmem:[#allocation5 + $0x258] sm:$0xff]
    %v196 = vld [vmem:[#allocation5 + $0x260] sm:$0xff]
    %v197 = vld [vmem:[#allocation5 + $0x268] sm:$0xff]
    %v198 = vld [vmem:[#allocation5 + $0x270] sm:$0xff]
    %v199 = vld [vmem:[#allocation5 + $0x278] sm:$0xff]
    %v200 = vld [vmem:[#allocation5 + $0x280] sm:$0xff]
    %v201 = vld [vmem:[#allocation5 + $0x288] sm:$0xff]
    %v202 = vld [vmem:[#allocation5 + $0x290] sm:$0xff]
    %v203 = vld [vmem:[#allocation5 + $0x298] sm:$0xff]
    %v204 = vld [vmem:[#allocation5 + $0x2a0] sm:$0xff]
    %v205 = vld [vmem:[#allocation5 + $0x2a8] sm:$0xff]
    %v206 = vld [vmem:[#allocation5 + $0x2b0] sm:$0xff]
    %v207 = vld [vmem:[#allocation5 + $0x2b8] sm:$0xff]
    %v208 = vld [vmem:[#allocation5 + $0x2c0] sm:$0xff]
    %v209 = vld [vmem:[#allocation5 + $0x2c8] sm:$0xff]
    %v210 = vld [vmem:[#allocation5 + $0x2d0] sm:$0xff]
    %v211 = vld [vmem:[#allocation5 + $0x2d8] sm:$0xff]
    %v212 = vld [vmem:[#allocation5 + $0x2e0] sm:$0xff]
    %v213 = vld [vmem:[#allocation5 + $0x2e8] sm:$0xff]
    %v214 = vld [vmem:[#allocation5 + $0x2f0] sm:$0xff]
    %v215 = vld [vmem:[#allocation5 + $0x2f8] sm:$0xff]
    %v216 = vld [vmem:[#allocation5 + $0x300] sm:$0xff]
    %v217 = vld [vmem:[#allocation5 + $0x308] sm:$0xff]
    %v218 = vld [vmem:[#allocation5 + $0x310] sm:$0xff]
    %v219 = vld [vmem:[#allocation5 + $0x318] sm:$0xff]
    %v220 = vld [vmem:[#allocation5 + $0x320] sm:$0xff]
    %v221 = vld [vmem:[#allocation5 + $0x328] sm:$0xff]
    %v222 = vld [vmem:[#allocation5 + $0x330] sm:$0xff]
    %v223 = vld [vmem:[#allocation5 + $0x338] sm:$0xff]
    %v224 = vld [vmem:[#allocation5 + $0x340] sm:$0xff]
    %v225 = vld [vmem:[#allocation5 + $0x348] sm:$0xff]
    %v226 = vld [vmem:[#allocation5 + $0x350] sm:$0xff]
    %v227 = vld [vmem:[#allocation5 + $0x358] sm:$0xff]
    %v228 = vld [vmem:[#allocation5 + $0x360] sm:$0xff]
    %v229 = vld [vmem:[#allocation5 + $0x368] sm:$0xff]
    %v230 = vld [vmem:[#allocation5 + $0x370] sm:$0xff]
    %v231 = vld [vmem:[#allocation5 + $0x378] sm:$0xff]
    %v232 = vld [vmem:[#allocation5 + $0x380] sm:$0xff]
    %v233 = vld [vmem:[#allocation5 + $0x388] sm:$0xff]
    %v234 = vld [vmem:[#allocation5 + $0x390] sm:$0xff]
    %v235 = vld [vmem:[#allocation5 + $0x398] sm:$0xff]
    %v236 = vld [vmem:[#allocation5 + $0x3a0] sm:$0xff]
    %v237 = vld [vmem:[#allocation5 + $0x3a8] sm:$0xff]
    %v238 = vld [vmem:[#allocation5 + $0x3b0] sm:$0xff]
    %v239 = vld [vmem:[#allocation5 + $0x3b8] sm:$0xff]
    %v240 = vld [vmem:[#allocation5 + $0x3c0] sm:$0xff]
    %v241 = vld [vmem:[#allocation5 + $0x3c8] sm:$0xff]
    %v242 = vld [vmem:[#allocation5 + $0x3d0] sm:$0xff]
    %v243 = vld [vmem:[#allocation5 + $0x3d8] sm:$0xff]
    %v244 = vld [vmem:[#allocation5 + $0x3e0] sm:$0xff]
    %v245 = vld [vmem:[#allocation5 + $0x3e8] sm:$0xff]
    %v246 = vld [vmem:[#allocation5 + $0x3f0] sm:$0xff]
    %v247 = vld [vmem:[#allocation5 + $0x3f8] sm:$0xff]
    %248 = vmatprep.subr.mxu0 %v121
    %249 = vmatpush1.msra.mxu0 %v120
    %250 = vmatprep.subr.mxu0 %v125
    %251 = vmatpush1.msra.mxu0 %v124
    %252 = vmatprep.subr.mxu0 %v129
    %253 = vmatpush1.msra.mxu0 %v128
    %254 = vmatprep.subr.mxu0 %v133
    %255 = vmatpush1.msra.mxu0 %v132
    %256 = vmatprep.subr.mxu0 %v137
    %257 = vmatpush1.msra.mxu0 %v136
    %258 = vmatprep.subr.mxu0 %v141
    %259 = vmatpush1.msra.mxu0 %v140
    %260 = vmatprep.subr.mxu0 %v145
    %261 = vmatpush1.msra.mxu0 %v144
    %262 = vmatprep.subr.mxu0 %v149
    %263 = vmatpush1.msra.mxu0 %v148
    %264 = vmatprep.subr.mxu0 %v153
    %265 = vmatpush1.msra.mxu0 %v152
    %266 = vmatprep.subr.mxu0 %v157
    %267 = vmatpush1.msra.mxu0 %v156
    %268 = vmatprep.subr.mxu0 %v161
    %269 = vmatpush1.msra.mxu0 %v160
    %270 = vmatprep.subr.mxu0 %v165
    %271 = vmatpush1.msra.mxu0 %v164
    %272 = vmatprep.subr.mxu0 %v169
    %273 = vmatpush1.msra.mxu0 %v168
    %274 = vmatprep.subr.mxu0 %v173
    %275 = vmatpush1.msra.mxu0 %v172
    %276 = vmatprep.subr.mxu0 %v177
    %277 = vmatpush1.msra.mxu0 %v176
    %278 = vmatprep.subr.mxu0 %v181
    %279 = vmatpush1.msra.mxu0 %v180
    %280 = vmatprep.subr.mxu0 %v185
    %281 = vmatpush1.msra.mxu0 %v184
    %282 = vmatprep.subr.mxu0 %v189
    %283 = vmatpush1.msra.mxu0 %v188
    %284 = vmatprep.subr.mxu0 %v193
    %285 = vmatpush1.msra.mxu0 %v192
    %286 = vmatprep.subr.mxu0 %v197
    %287 = vmatpush1.msra.mxu0 %v196
    %288 = vmatprep.subr.mxu0 %v201
    %289 = vmatpush1.msra.mxu0 %v200
    %290 = vmatprep.subr.mxu0 %v205
    %291 = vmatpush1.msra.mxu0 %v204
    %292 = vmatprep.subr.mxu0 %v209
    %293 = vmatpush1.msra.mxu0 %v208
    %294 = vmatprep.subr.mxu0 %v213
    %295 = vmatpush1.msra.mxu0 %v212
    %296 = vmatprep.subr.mxu0 %v217
    %297 = vmatpush1.msra.mxu0 %v216
    %298 = vmatprep.subr.mxu0 %v221
    %299 = vmatpush1.msra.mxu0 %v220
    %300 = vmatprep.subr.mxu0 %v225
    %301 = vmatpush1.msra.mxu0 %v224
    %302 = vmatprep.subr.mxu0 %v229
    %303 = vmatpush1.msra.mxu0 %v228
    %304 = vmatprep.subr.mxu0 %v233
    %305 = vmatpush1.msra.mxu0 %v232
    %306 = vmatprep.subr.mxu0 %v237
    %307 = vmatpush1.msra.mxu0 %v236
    %308 = vmatprep.subr.mxu0 %v241
    %309 = vmatpush1.msra.mxu0 %v240
    %310 = vmatprep.subr.mxu0 %v245
    %311 = vmatpush1.msra.mxu0 %v244
    %312 = vmatprep.mubr.f32.mxu0 %v57
    %313 = vmatmul.mubr.f32.gmra.mrb[0].mxu0 %v56
    %v314 = vpop.f32.mrb[0].mxu0
    %v315 = vadd.f32 0.0, %v314
    %v316 = vpop.f32.mrb[0].mxu0
    %v317 = vadd.f32 0.0, %v316
    %318 = vmatprep.mubr.f32.mxu0 %v59
    %319 = vmatmul.mubr.f32.gmra.mrb[0].mxu0 %v58
    %v320 = vpop.f32.mrb[0].mxu0
    %v321 = vadd.f32 0.0, %v320
    %v322 = vpop.f32.mrb[0].mxu0
    %v323 = vadd.f32 0.0, %v322
    %324 = vmatprep.mubr.f32.mxu0 %v61
    %325 = vmatmul.mubr.f32.gmra.mrb[0].mxu0 %v60
    %v326 = vpop.f32.mrb[0].mxu0
    %v327 = vadd.f32 0.0, %v326
    %v328 = vpop.f32.mrb[0].mxu0
    %v329 = vadd.f32 0.0, %v328
    %330 = vmatprep.mubr.f32.mxu0 %v63
    %331 = vmatmul.mubr.f32.gmra.mrb[0].mxu0 %v62
    %v332 = vpop.f32.mrb[0].mxu0
    %v333 = vadd.f32 0.0, %v332
    %v334 = vpop.f32.mrb[0].mxu0
    %v335 = vadd.f32 0.0, %v334
    %336 = vmatprep.mubr.f32.mxu0 %v65
    %337 = vmatmul.mubr.f32.gmra.mrb[0].mxu0 %v64
    %v338 = vpop.f32.mrb[0].mxu0
    %v339 = vadd.f32 0.0, %v338
    %v340 = vpop.f32.mrb[0].mxu0
    %v341 = vadd.f32 0.0, %v340
    %342 = vmatprep.mubr.f32.mxu0 %v67
    %343 = vmatmul.mubr.f32.gmra.mrb[0].mxu0 %v66
    %v344 = vpop.f32.mrb[0].mxu0
    %v345 = vadd.f32 0.0, %v344
    %v346 = vpop.f32.mrb[0].mxu0
    %v347 = vadd.f32 0.0, %v346
    %348 = vmatprep.mubr.f32.mxu0 %v69
    %349 = vmatmul.mubr.f32.gmra.mrb[0].mxu0 %v68
    %v350 = vpop.f32.mrb[0].mxu0
    %v351 = vadd.f32 0.0, %v350
    %v352 = vpop.f32.mrb[0].mxu0
    %v353 = vadd.f32 0.0, %v352
    %354 = vmatprep.mubr.f32.mxu0 %v71
    %355 = vmatmul.mubr.f32.gmra.mrb[0].mxu0 %v70
    %v356 = vpop.f32.mrb[0].mxu0
    %v357 = vadd.f32 0.0, %v356
    %v358 = vpop.f32.mrb[0].mxu0
    %v359 = vadd.f32 0.0, %v358
    %360 = vmatprep.mubr.f32.mxu0 %v73
    %361 = vmatmul.mubr.f32.gmra.mrb[0].mxu0 %v72
    %v362 = vpop.f32.mrb[0].mxu0
    %v363 = vadd.f32 0.0, %v362
    %v364 = vpop.f32.mrb[0].mxu0
    %v365 = vadd.f32 0.0, %v364
    %366 = vmatprep.mubr.f32.mxu0 %v75
    %367 = vmatmul.mubr.f32.gmra.mrb[0].mxu0 %v74
    %v368 = vpop.f32.mrb[0].mxu0
    %v369 = vadd.f32 0.0, %v368
    %v370 = vpop.f32.mrb[0].mxu0
    %v371 = vadd.f32 0.0, %v370
    %372 = vmatprep.mubr.f32.mxu0 %v77
    %373 = vmatmul.mubr.f32.gmra.mrb[0].mxu0 %v76
    %v374 = vpop.f32.mrb[0].mxu0
    %v375 = vadd.f32 0.0, %v374
    %v376 = vpop.f32.mrb[0].mxu0
    %v377 = vadd.f32 0.0, %v376
    %378 = vmatprep.mubr.f32.mxu0 %v79
    %379 = vmatmul.mubr.f32.gmra.mrb[0].mxu0 %v78
    %v380 = vpop.f32.mrb[0].mxu0
    %v381 = vadd.f32 0.0, %v380
    %v382 = vpop.f32.mrb[0].mxu0
    %v383 = vadd.f32 0.0, %v382
    %384 = vmatprep.mubr.f32.mxu0 %v81
    %385 = vmatmul.mubr.f32.gmra.mrb[0].mxu0 %v80
    %v386 = vpop.f32.mrb[0].mxu0
    %v387 = vadd.f32 0.0, %v386
    %v388 = vpop.f32.mrb[0].mxu0
    %v389 = vadd.f32 0.0, %v388
    %390 = vmatprep.mubr.f32.mxu0 %v83
    %391 = vmatmul.mubr.f32.gmra.mrb[0].mxu0 %v82
    %v392 = vpop.f32.mrb[0].mxu0
    %v393 = vadd.f32 0.0, %v392
    %v394 = vpop.f32.mrb[0].mxu0
    %v395 = vadd.f32 0.0, %v394
    %396 = vmatprep.mubr.f32.mxu0 %v85
    %397 = vmatmul.mubr.f32.gmra.mrb[0].mxu0 %v84
    %v398 = vpop.f32.mrb[0].mxu0
    %v399 = vadd.f32 0.0, %v398
    %v400 = vpop.f32.mrb[0].mxu0
    %v401 = vadd.f32 0.0, %v400
    %402 = vmatprep.mubr.f32.mxu0 %v87
    %403 = vmatmul.mubr.f32.gmra.mrb[0].mxu0 %v86
    %v404 = vpop.f32.mrb[0].mxu0
    %v405 = vadd.f32 0.0, %v404
    %v406 = vpop.f32.mrb[0].mxu0
    %v407 = vadd.f32 0.0, %v406
    %408 = vmatprep.mubr.f32.mxu0 %v89
    %409 = vmatmul.mubr.f32.gmra.mrb[0].mxu0 %v88
    %v410 = vpop.f32.mrb[0].mxu0
    %v411 = vadd.f32 0.0, %v410
    %v412 = vpop.f32.mrb[0].mxu0
    %v413 = vadd.f32 0.0, %v412
    %414 = vmatprep.mubr.f32.mxu0 %v91
    %415 = vmatmul.mubr.f32.gmra.mrb[0].mxu0 %v90
    %v416 = vpop.f32.mrb[0].mxu0
    %v417 = vadd.f32 0.0, %v416
    %v418 = vpop.f32.mrb[0].mxu0
    %v419 = vadd.f32 0.0, %v418
    %420 = vmatprep.mubr.f32.mxu0 %v93
    %421 = vmatmul.mubr.f32.gmra.mrb[0].mxu0 %v92
    %v422 = vpop.f32.mrb[0].mxu0
    %v423 = vadd.f32 0.0, %v422
    %v424 = vpop.f32.mrb[0].mxu0
    %v425 = vadd.f32 0.0, %v424
    %426 = vmatprep.mubr.f32.mxu0 %v95
    %427 = vmatmul.mubr.f32.gmra.mrb[0].mxu0 %v94
    %v428 = vpop.f32.mrb[0].mxu0
    %v429 = vadd.f32 0.0, %v428
    %v430 = vpop.f32.mrb[0].mxu0
    %v431 = vadd.f32 0.0, %v430
    %432 = vmatprep.mubr.f32.mxu0 %v97
    %433 = vmatmul.mubr.f32.gmra.mrb[0].mxu0 %v96
    %v434 = vpop.f32.mrb[0].mxu0
    %v435 = vadd.f32 0.0, %v434
    %v436 = vpop.f32.mrb[0].mxu0
    %v437 = vadd.f32 0.0, %v436
    %438 = vmatprep.mubr.f32.mxu0 %v99
    %439 = vmatmul.mubr.f32.gmra.mrb[0].mxu0 %v98
    %v440 = vpop.f32.mrb[0].mxu0
    %v441 = vadd.f32 0.0, %v440
    %v442 = vpop.f32.mrb[0].mxu0
    %v443 = vadd.f32 0.0, %v442
    %444 = vmatprep.mubr.f32.mxu0 %v101
    %445 = vmatmul.mubr.f32.gmra.mrb[0].mxu0 %v100
    %v446 = vpop.f32.mrb[0].mxu0
    %v447 = vadd.f32 0.0, %v446
    %v448 = vpop.f32.mrb[0].mxu0
    %v449 = vadd.f32 0.0, %v448
    %450 = vmatprep.mubr.f32.mxu0 %v103
    %451 = vmatmul.mubr.f32.gmra.mrb[0].mxu0 %v102
    %v452 = vpop.f32.mrb[0].mxu0
    %v453 = vadd.f32 0.0, %v452
    %v454 = vpop.f32.mrb[0].mxu0
    %v455 = vadd.f32 0.0, %v454
    %456 = vmatprep.mubr.f32.mxu0 %v105
    %457 = vmatmul.mubr.f32.gmra.mrb[0].mxu0 %v104
    %v458 = vpop.f32.mrb[0].mxu0
    %v459 = vadd.f32 0.0, %v458
    %v460 = vpop.f32.mrb[0].mxu0
    %v461 = vadd.f32 0.0, %v460
    %462 = vmatprep.mubr.f32.mxu0 %v107
    %463 = vmatmul.mubr.f32.gmra.mrb[0].mxu0 %v106
    %v464 = vpop.f32.mrb[0].mxu0
    %v465 = vadd.f32 0.0, %v464
    %v466 = vpop.f32.mrb[0].mxu0
    %v467 = vadd.f32 0.0, %v466
    %468 = vmatprep.mubr.f32.mxu0 %v109
    %469 = vmatmul.mubr.f32.gmra.mrb[0].mxu0 %v108
    %v470 = vpop.f32.mrb[0].mxu0
    %v471 = vadd.f32 0.0, %v470
    %v472 = vpop.f32.mrb[0].mxu0
    %v473 = vadd.f32 0.0, %v472
    %474 = vmatprep.mubr.f32.mxu0 %v111
    %475 = vmatmul.mubr.f32.gmra.mrb[0].mxu0 %v110
    %v476 = vpop.f32.mrb[0].mxu0
    %v477 = vadd.f32 0.0, %v476
    %v478 = vpop.f32.mrb[0].mxu0
    %v479 = vadd.f32 0.0, %v478
    %480 = vmatprep.mubr.f32.mxu0 %v113
    %481 = vmatmul.mubr.f32.gmra.mrb[0].mxu0 %v112
    %v482 = vpop.f32.mrb[0].mxu0
    %v483 = vadd.f32 0.0, %v482
    %v484 = vpop.f32.mrb[0].mxu0
    %v485 = vadd.f32 0.0, %v484
    %486 = vmatprep.mubr.f32.mxu0 %v115
    %487 = vmatmul.mubr.f32.gmra.mrb[0].mxu0 %v114
    %v488 = vpop.f32.mrb[0].mxu0
    %v489 = vadd.f32 0.0, %v488
    %v490 = vpop.f32.mrb[0].mxu0
    %v491 = vadd.f32 0.0, %v490
    %492 = vmatprep.mubr.f32.mxu0 %v117
    %493 = vmatmul.mubr.f32.gmra.mrb[0].mxu0 %v116
    %v494 = vpop.f32.mrb[0].mxu0
    %v495 = vadd.f32 0.0, %v494
    %v496 = vpop.f32.mrb[0].mxu0
    %v497 = vadd.f32 0.0, %v496
    %498 = vmatprep.mubr.f32.mxu0 %v119
    %499 = vmatmul.mubr.f32.gmra.mrb[0].mxu0 %v118
    %v500 = vpop.f32.mrb[0].mxu0
    %v501 = vadd.f32 0.0, %v500
    %v502 = vpop.f32.mrb[0].mxu0
    %v503 = vadd.f32 0.0, %v502
    %504 = vdwg.mxu0
    %505 = vmatprep.subr.mxu0 %v123
    %506 = vmatpush1.msra.mxu0 %v122
    %507 = vmatprep.subr.mxu0 %v127
    %508 = vmatpush1.msra.mxu0 %v126
    %509 = vmatprep.subr.mxu0 %v131
    %510 = vmatpush1.msra.mxu0 %v130
    %511 = vmatprep.subr.mxu0 %v135
    %512 = vmatpush1.msra.mxu0 %v134
    %513 = vmatprep.subr.mxu0 %v139
    %514 = vmatpush1.msra.mxu0 %v138
    %515 = vmatprep.subr.mxu0 %v143
    %516 = vmatpush1.msra.mxu0 %v142
    %517 = vmatprep.subr.mxu0 %v147
    %518 = vmatpush1.msra.mxu0 %v146
    %519 = vmatprep.subr.mxu0 %v151
    %520 = vmatpush1.msra.mxu0 %v150
    %521 = vmatprep.subr.mxu0 %v155
    %522 = vmatpush1.msra.mxu0 %v154
    %523 = vmatprep.subr.mxu0 %v159
    %524 = vmatpush1.msra.mxu0 %v158
    %525 = vmatprep.subr.mxu0 %v163
    %526 = vmatpush1.msra.mxu0 %v162
    %527 = vmatprep.subr.mxu0 %v167
    %528 = vmatpush1.msra.mxu0 %v166
    %529 = vmatprep.subr.mxu0 %v171
    %530 = vmatpush1.msra.mxu0 %v170
    %531 = vmatprep.subr.mxu0 %v175
    %532 = vmatpush1.msra.mxu0 %v174
    %533 = vmatprep.subr.mxu0 %v179
    %534 = vmatpush1.msra.mxu0 %v178
    %535 = vmatprep.subr.mxu0 %v183
    %536 = vmatpush1.msra.mxu0 %v182
    %537 = vmatprep.subr.mxu0 %v187
    %538 = vmatpush1.msra.mxu0 %v186
    %539 = vmatprep.subr.mxu0 %v191
    %540 = vmatpush1.msra.mxu0 %v190
    %541 = vmatprep.subr.mxu0 %v195
    %542 = vmatpush1.msra.mxu0 %v194
    %543 = vmatprep.subr.mxu0 %v199
    %544 = vmatpush1.msra.mxu0 %v198
    %545 = vmatprep.subr.mxu0 %v203
    %546 = vmatpush1.msra.mxu0 %v202
    %547 = vmatprep.subr.mxu0 %v207
    %548 = vmatpush1.msra.mxu0 %v206
    %549 = vmatprep.subr.mxu0 %v211
    %550 = vmatpush1.msra.mxu0 %v210
    %551 = vmatprep.subr.mxu0 %v215
    %552 = vmatpush1.msra.mxu0 %v214
    %553 = vmatprep.subr.mxu0 %v219
    %554 = vmatpush1.msra.mxu0 %v218
    %555 = vmatprep.subr.mxu0 %v223
    %556 = vmatpush1.msra.mxu0 %v222
    %557 = vmatprep.subr.mxu0 %v227
    %558 = vmatpush1.msra.mxu0 %v226
    %559 = vmatprep.subr.mxu0 %v231
    %560 = vmatpush1.msra.mxu0 %v230
    %561 = vmatprep.subr.mxu0 %v235
    %562 = vmatpush1.msra.mxu0 %v234
    %563 = vmatprep.subr.mxu0 %v239
    %564 = vmatpush1.msra.mxu0 %v238
    %565 = vmatprep.subr.mxu0 %v243
    %566 = vmatpush1.msra.mxu0 %v242
    %567 = vmatprep.subr.mxu0 %v247
    %568 = vmatpush1.msra.mxu0 %v246
    %569 = vmatprep.mubr.f32.mxu0 %v57
    %570 = vmatmul.mubr.f32.gmra.mrb[0].mxu0 %v56
    %v571 = vpop.f32.mrb[0].mxu0
    %v572 = vadd.f32 0.0, %v571
    %v573 = vpop.f32.mrb[0].mxu0
    %v574 = vadd.f32 0.0, %v573
    %575 = vmatprep.mubr.f32.mxu0 %v59
    %576 = vmatmul.mubr.f32.gmra.mrb[0].mxu0 %v58
    %v577 = vpop.f32.mrb[0].mxu0
    %v578 = vadd.f32 0.0, %v577
    %v579 = vpop.f32.mrb[0].mxu0
    %v580 = vadd.f32 0.0, %v579
    %581 = vmatprep.mubr.f32.mxu0 %v61
    %582 = vmatmul.mubr.f32.gmra.mrb[0].mxu0 %v60
    %v583 = vpop.f32.mrb[0].mxu0
    %v584 = vadd.f32 0.0, %v583
    %v585 = vpop.f32.mrb[0].mxu0
    %v586 = vadd.f32 0.0, %v585
    %587 = vmatprep.mubr.f32.mxu0 %v63
    %588 = vmatmul.mubr.f32.gmra.mrb[0].mxu0 %v62
    %v589 = vpop.f32.mrb[0].mxu0
    %v590 = vadd.f32 0.0, %v589
    %v591 = vpop.f32.mrb[0].mxu0
    %v592 = vadd.f32 0.0, %v591
    %593 = vmatprep.mubr.f32.mxu0 %v65
    %594 = vmatmul.mubr.f32.gmra.mrb[0].mxu0 %v64
    %v595 = vpop.f32.mrb[0].mxu0
    %v596 = vadd.f32 0.0, %v595
    %v597 = vpop.f32.mrb[0].mxu0
    %v598 = vadd.f32 0.0, %v597
    %599 = vmatprep.mubr.f32.mxu0 %v67
    %600 = vmatmul.mubr.f32.gmra.mrb[0].mxu0 %v66
    %v601 = vpop.f32.mrb[0].mxu0
    %v602 = vadd.f32 0.0, %v601
    %v603 = vpop.f32.mrb[0].mxu0
    %v604 = vadd.f32 0.0, %v603
    %605 = vmatprep.mubr.f32.mxu0 %v69
    %606 = vmatmul.mubr.f32.gmra.mrb[0].mxu0 %v68
    %v607 = vpop.f32.mrb[0].mxu0
    %v608 = vadd.f32 0.0, %v607
    %v609 = vpop.f32.mrb[0].mxu0
    %v610 = vadd.f32 0.0, %v609
    %611 = vmatprep.mubr.f32.mxu0 %v71
    %612 = vmatmul.mubr.f32.gmra.mrb[0].mxu0 %v70
    %v613 = vpop.f32.mrb[0].mxu0
    %v614 = vadd.f32 0.0, %v613
    %v615 = vpop.f32.mrb[0].mxu0
    %v616 = vadd.f32 0.0, %v615
    %617 = vmatprep.mubr.f32.mxu0 %v73
    %618 = vmatmul.mubr.f32.gmra.mrb[0].mxu0 %v72
    %v619 = vpop.f32.mrb[0].mxu0
    %v620 = vadd.f32 0.0, %v619
    %v621 = vpop.f32.mrb[0].mxu0
    %v622 = vadd.f32 0.0, %v621
    %623 = vmatprep.mubr.f32.mxu0 %v75
    %624 = vmatmul.mubr.f32.gmra.mrb[0].mxu0 %v74
    %v625 = vpop.f32.mrb[0].mxu0
    %v626 = vadd.f32 0.0, %v625
    %v627 = vpop.f32.mrb[0].mxu0
    %v628 = vadd.f32 0.0, %v627
    %629 = vmatprep.mubr.f32.mxu0 %v77
    %630 = vmatmul.mubr.f32.gmra.mrb[0].mxu0 %v76
    %v631 = vpop.f32.mrb[0].mxu0
    %v632 = vadd.f32 0.0, %v631
    %v633 = vpop.f32.mrb[0].mxu0
    %v634 = vadd.f32 0.0, %v633
    %635 = vmatprep.mubr.f32.mxu0 %v79
    %636 = vmatmul.mubr.f32.gmra.mrb[0].mxu0 %v78
    %v637 = vpop.f32.mrb[0].mxu0
    %v638 = vadd.f32 0.0, %v637
    %v639 = vpop.f32.mrb[0].mxu0
    %v640 = vadd.f32 0.0, %v639
    %641 = vmatprep.mubr.f32.mxu0 %v81
    %642 = vmatmul.mubr.f32.gmra.mrb[0].mxu0 %v80
    %v643 = vpop.f32.mrb[0].mxu0
    %v644 = vadd.f32 0.0, %v643
    %v645 = vpop.f32.mrb[0].mxu0
    %v646 = vadd.f32 0.0, %v645
    %647 = vmatprep.mubr.f32.mxu0 %v83
    %648 = vmatmul.mubr.f32.gmra.mrb[0].mxu0 %v82
    %v649 = vpop.f32.mrb[0].mxu0
    %v650 = vadd.f32 0.0, %v649
    %v651 = vpop.f32.mrb[0].mxu0
    %v652 = vadd.f32 0.0, %v651
    %653 = vmatprep.mubr.f32.mxu0 %v85
    %654 = vmatmul.mubr.f32.gmra.mrb[0].mxu0 %v84
    %v655 = vpop.f32.mrb[0].mxu0
    %v656 = vadd.f32 0.0, %v655
    %v657 = vpop.f32.mrb[0].mxu0
    %v658 = vadd.f32 0.0, %v657
    %659 = vmatprep.mubr.f32.mxu0 %v87
    %660 = vmatmul.mubr.f32.gmra.mrb[0].mxu0 %v86
    %v661 = vpop.f32.mrb[0].mxu0
    %v662 = vadd.f32 0.0, %v661
    %v663 = vpop.f32.mrb[0].mxu0
    %v664 = vadd.f32 0.0, %v663
    %665 = vmatprep.mubr.f32.mxu0 %v89
    %666 = vmatmul.mubr.f32.gmra.mrb[0].mxu0 %v88
    %v667 = vpop.f32.mrb[0].mxu0
    %v668 = vadd.f32 0.0, %v667
    %v669 = vpop.f32.mrb[0].mxu0
    %v670 = vadd.f32 0.0, %v669
    %671 = vmatprep.mubr.f32.mxu0 %v91
    %672 = vmatmul.mubr.f32.gmra.mrb[0].mxu0 %v90
    %v673 = vpop.f32.mrb[0].mxu0
    %v674 = vadd.f32 0.0, %v673
    %v675 = vpop.f32.mrb[0].mxu0
    %v676 = vadd.f32 0.0, %v675
    %677 = vmatprep.mubr.f32.mxu0 %v93
    %678 = vmatmul.mubr.f32.gmra.mrb[0].mxu0 %v92
    %v679 = vpop.f32.mrb[0].mxu0
    %v680 = vadd.f32 0.0, %v679
    %v681 = vpop.f32.mrb[0].mxu0
    %v682 = vadd.f32 0.0, %v681
    %683 = vmatprep.mubr.f32.mxu0 %v95
    %684 = vmatmul.mubr.f32.gmra.mrb[0].mxu0 %v94
    %v685 = vpop.f32.mrb[0].mxu0
    %v686 = vadd.f32 0.0, %v685
    %v687 = vpop.f32.mrb[0].mxu0
    %v688 = vadd.f32 0.0, %v687
    %689 = vmatprep.mubr.f32.mxu0 %v97
    %690 = vmatmul.mubr.f32.gmra.mrb[0].mxu0 %v96
    %v691 = vpop.f32.mrb[0].mxu0
    %v692 = vadd.f32 0.0, %v691
    %v693 = vpop.f32.mrb[0].mxu0
    %v694 = vadd.f32 0.0, %v693
    %695 = vmatprep.mubr.f32.mxu0 %v99
    %696 = vmatmul.mubr.f32.gmra.mrb[0].mxu0 %v98
    %v697 = vpop.f32.mrb[0].mxu0
    %v698 = vadd.f32 0.0, %v697
    %v699 = vpop.f32.mrb[0].mxu0
    %v700 = vadd.f32 0.0, %v699
    %701 = vmatprep.mubr.f32.mxu0 %v101
    %702 = vmatmul.mubr.f32.gmra.mrb[0].mxu0 %v100
    %v703 = vpop.f32.mrb[0].mxu0
    %v704 = vadd.f32 0.0, %v703
    %v705 = vpop.f32.mrb[0].mxu0
    %v706 = vadd.f32 0.0, %v705
    %707 = vmatprep.mubr.f32.mxu0 %v103
    %708 = vmatmul.mubr.f32.gmra.mrb[0].mxu0 %v102
    %v709 = vpop.f32.mrb[0].mxu0
    %v710 = vadd.f32 0.0, %v709
    %v711 = vpop.f32.mrb[0].mxu0
    %v712 = vadd.f32 0.0, %v711
    %713 = vmatprep.mubr.f32.mxu0 %v105
    %714 = vmatmul.mubr.f32.gmra.mrb[0].mxu0 %v104
    %v715 = vpop.f32.mrb[0].mxu0
    %v716 = vadd.f32 0.0, %v715
    %v717 = vpop.f32.mrb[0].mxu0
    %v718 = vadd.f32 0.0, %v717
    %719 = vmatprep.mubr.f32.mxu0 %v107
    %720 = vmatmul.mubr.f32.gmra.mrb[0].mxu0 %v106
    %v721 = vpop.f32.mrb[0].mxu0
    %v722 = vadd.f32 0.0, %v721
    %v723 = vpop.f32.mrb[0].mxu0
    %v724 = vadd.f32 0.0, %v723
    %725 = vmatprep.mubr.f32.mxu0 %v109
    %726 = vmatmul.mubr.f32.gmra.mrb[0].mxu0 %v108
    %v727 = vpop.f32.mrb[0].mxu0
    %v728 = vadd.f32 0.0, %v727
    %v729 = vpop.f32.mrb[0].mxu0
    %v730 = vadd.f32 0.0, %v729
    %731 = vmatprep.mubr.f32.mxu0 %v111
    %732 = vmatmul.mubr.f32.gmra.mrb[0].mxu0 %v110
    %v733 = vpop.f32.mrb[0].mxu0
    %v734 = vadd.f32 0.0, %v733
    %v735 = vpop.f32.mrb[0].mxu0
    %v736 = vadd.f32 0.0, %v735
    %737 = vmatprep.mubr.f32.mxu0 %v113
    %738 = vmatmul.mubr.f32.gmra.mrb[0].mxu0 %v112
    %v739 = vpop.f32.mrb[0].mxu0
    %v740 = vadd.f32 0.0, %v739
    %v741 = vpop.f32.mrb[0].mxu0
    %v742 = vadd.f32 0.0, %v741
    %743 = vmatprep.mubr.f32.mxu0 %v115
    %744 = vmatmul.mubr.f32.gmra.mrb[0].mxu0 %v114
    %v745 = vpop.f32.mrb[0].mxu0
    %v746 = vadd.f32 0.0, %v745
    %v747 = vpop.f32.mrb[0].mxu0
    %v748 = vadd.f32 0.0, %v747
    %749 = vmatprep.mubr.f32.mxu0 %v117
    %750 = vmatmul.mubr.f32.gmra.mrb[0].mxu0 %v116
    %v751 = vpop.f32.mrb[0].mxu0
    %v752 = vadd.f32 0.0, %v751
    %v753 = vpop.f32.mrb[0].mxu0
    %v754 = vadd.f32 0.0, %v753
    %755 = vmatprep.mubr.f32.mxu0 %v119
    %756 = vmatmul.mubr.f32.gmra.mrb[0].mxu0 %v118
    %v757 = vpop.f32.mrb[0].mxu0
    %v758 = vadd.f32 0.0, %v757
    %v759 = vpop.f32.mrb[0].mxu0
    %v760 = vadd.f32 0.0, %v759
    %761 = vdwg.mxu0
    %v762 = vmul.f32 %v315, %v315
    %v763 = vmul.f32 %v317, %v317
    %v764 = vmul.f32 %v321, %v321
    %v765 = vmul.f32 %v323, %v323
    %v766 = vmul.f32 %v327, %v327
    %v767 = vmul.f32 %v329, %v329
    %v768 = vmul.f32 %v333, %v333
    %v769 = vmul.f32 %v335, %v335
    %v770 = vmul.f32 %v339, %v339
    %v771 = vmul.f32 %v341, %v341
    %v772 = vmul.f32 %v345, %v345
    %v773 = vmul.f32 %v347, %v347
    %v774 = vmul.f32 %v351, %v351
    %v775 = vmul.f32 %v353, %v353
    %v776 = vmul.f32 %v357, %v357
    %v777 = vmul.f32 %v359, %v359
    %v778 = vmul.f32 %v363, %v363
    %v779 = vmul.f32 %v365, %v365
    %v780 = vmul.f32 %v369, %v369
    %v781 = vmul.f32 %v371, %v371
    %v782 = vmul.f32 %v375, %v375
    %v783 = vmul.f32 %v377, %v377
    %v784 = vmul.f32 %v381, %v381
    %v785 = vmul.f32 %v383, %v383
    %v786 = vmul.f32 %v387, %v387
    %v787 = vmul.f32 %v389, %v389
    %v788 = vmul.f32 %v393, %v393
    %v789 = vmul.f32 %v395, %v395
    %v790 = vmul.f32 %v399, %v399
    %v791 = vmul.f32 %v401, %v401
    %v792 = vmul.f32 %v405, %v405
    %v793 = vmul.f32 %v407, %v407
    %v794 = vmul.f32 %v411, %v411
    %v795 = vmul.f32 %v413, %v413
    %v796 = vmul.f32 %v417, %v417
    %v797 = vmul.f32 %v419, %v419
    %v798 = vmul.f32 %v423, %v423
    %v799 = vmul.f32 %v425, %v425
    %v800 = vmul.f32 %v429, %v429
    %v801 = vmul.f32 %v431, %v431
    %v802 = vmul.f32 %v435, %v435
    %v803 = vmul.f32 %v437, %v437
    %v804 = vmul.f32 %v441, %v441
    %v805 = vmul.f32 %v443, %v443
    %v806 = vmul.f32 %v447, %v447
    %v807 = vmul.f32 %v449, %v449
    %v808 = vmul.f32 %v453, %v453
    %v809 = vmul.f32 %v455, %v455
    %v810 = vmul.f32 %v459, %v459
    %v811 = vmul.f32 %v461, %v461
    %v812 = vmul.f32 %v465, %v465
    %v813 = vmul.f32 %v467, %v467
    %v814 = vmul.f32 %v471, %v471
    %v815 = vmul.f32 %v473, %v473
    %v816 = vmul.f32 %v477, %v477
    %v817 = vmul.f32 %v479, %v479
    %v818 = vmul.f32 %v483, %v483
    %v819 = vmul.f32 %v485, %v485
    %v820 = vmul.f32 %v489, %v489
    %v821 = vmul.f32 %v491, %v491
    %v822 = vmul.f32 %v495, %v495
    %v823 = vmul.f32 %v497, %v497
    %v824 = vmul.f32 %v501, %v501
    %v825 = vmul.f32 %v503, %v503
    %v826 = vmul.f32 %v572, %v572
    %v827 = vmul.f32 %v574, %v574
    %v828 = vmul.f32 %v578, %v578
    %v829 = vmul.f32 %v580, %v580
    %v830 = vmul.f32 %v584, %v584
    %v831 = vmul.f32 %v586, %v586
    %v832 = vmul.f32 %v590, %v590
    %v833 = vmul.f32 %v592, %v592
    %v834 = vmul.f32 %v596, %v596
    %v835 = vmul.f32 %v598, %v598
    %v836 = vmul.f32 %v602, %v602
    %v837 = vmul.f32 %v604, %v604
    %v838 = vmul.f32 %v608, %v608
    %v839 = vmul.f32 %v610, %v610
    %v840 = vmul.f32 %v614, %v614
    %v841 = vmul.f32 %v616, %v616
    %v842 = vmul.f32 %v620, %v620
    %v843 = vmul.f32 %v622, %v622
    %v844 = vmul.f32 %v626, %v626
    %v845 = vmul.f32 %v628, %v628
    %v846 = vmul.f32 %v632, %v632
    %v847 = vmul.f32 %v634, %v634
    %v848 = vmul.f32 %v638, %v638
    %v849 = vmul.f32 %v640, %v640
    %v850 = vmul.f32 %v644, %v644
    %v851 = vmul.f32 %v646, %v646
    %v852 = vmul.f32 %v650, %v650
    %v853 = vmul.f32 %v652, %v652
    %v854 = vmul.f32 %v656, %v656
    %v855 = vmul.f32 %v658, %v658
    %v856 = vmul.f32 %v662, %v662
    %v857 = vmul.f32 %v664, %v664
    %v858 = vmul.f32 %v668, %v668
    %v859 = vmul.f32 %v670, %v670
    %v860 = vmul.f32 %v674, %v674
    %v861 = vmul.f32 %v676, %v676
    %v862 = vmul.f32 %v680, %v680
    %v863 = vmul.f32 %v682, %v682
    %v864 = vmul.f32 %v686, %v686
    %v865 = vmul.f32 %v688, %v688
    %v866 = vmul.f32 %v692, %v692
    %v867 = vmul.f32 %v694, %v694
    %v868 = vmul.f32 %v698, %v698
    %v869 = vmul.f32 %v700, %v700
    %v870 = vmul.f32 %v704, %v704
    %v871 = vmul.f32 %v706, %v706
    %v872 = vmul.f32 %v710, %v710
    %v873 = vmul.f32 %v712, %v712
    %v874 = vmul.f32 %v716, %v716
    %v875 = vmul.f32 %v718, %v718
    %v876 = vmul.f32 %v722, %v722
    %v877 = vmul.f32 %v724, %v724
    %v878 = vmul.f32 %v728, %v728
    %v879 = vmul.f32 %v730, %v730
    %v880 = vmul.f32 %v734, %v734
    %v881 = vmul.f32 %v736, %v736
    %v882 = vmul.f32 %v740, %v740
    %v883 = vmul.f32 %v742, %v742
    %v884 = vmul.f32 %v746, %v746
    %v885 = vmul.f32 %v748, %v748
    %v886 = vmul.f32 %v752, %v752
    %v887 = vmul.f32 %v754, %v754
    %v888 = vmul.f32 %v758, %v758
    %v889 = vmul.f32 %v760, %v760
    %v890 = vadd.f32 %v762, %v826
    %v891 = vadd.f32 %v763, %v827
    %v892 = vadd.f32 %v764, %v828
    %v893 = vadd.f32 %v765, %v829
    %v894 = vadd.f32 %v766, %v830
    %v895 = vadd.f32 %v767, %v831
    %v896 = vadd.f32 %v768, %v832
    %v897 = vadd.f32 %v769, %v833
    %v898 = vadd.f32 %v770, %v834
    %v899 = vadd.f32 %v771, %v835
    %v900 = vadd.f32 %v772, %v836
    %v901 = vadd.f32 %v773, %v837
    %v902 = vadd.f32 %v774, %v838
    %v903 = vadd.f32 %v775, %v839
    %v904 = vadd.f32 %v776, %v840
    %v905 = vadd.f32 %v777, %v841
    %v906 = vadd.f32 %v778, %v842
    %v907 = vadd.f32 %v779, %v843
    %v908 = vadd.f32 %v780, %v844
    %v909 = vadd.f32 %v781, %v845
    %v910 = vadd.f32 %v782, %v846
    %v911 = vadd.f32 %v783, %v847
    %v912 = vadd.f32 %v784, %v848
    %v913 = vadd.f32 %v785, %v849
    %v914 = vadd.f32 %v786, %v850
    %v915 = vadd.f32 %v787, %v851
    %v916 = vadd.f32 %v788, %v852
    %v917 = vadd.f32 %v789, %v853
    %v918 = vadd.f32 %v790, %v854
    %v919 = vadd.f32 %v791, %v855
    %v920 = vadd.f32 %v792, %v856
    %v921 = vadd.f32 %v793, %v857
    %v922 = vadd.f32 %v794, %v858
    %v923 = vadd.f32 %v795, %v859
    %v924 = vadd.f32 %v796, %v860
    %v925 = vadd.f32 %v797, %v861
    %v926 = vadd.f32 %v798, %v862
    %v927 = vadd.f32 %v799, %v863
    %v928 = vadd.f32 %v800, %v864
    %v929 = vadd.f32 %v801, %v865
    %v930 = vadd.f32 %v802, %v866
    %v931 = vadd.f32 %v803, %v867
    %v932 = vadd.f32 %v804, %v868
    %v933 = vadd.f32 %v805, %v869
    %v934 = vadd.f32 %v806, %v870
    %v935 = vadd.f32 %v807, %v871
    %v936 = vadd.f32 %v808, %v872
    %v937 = vadd.f32 %v809, %v873
    %v938 = vadd.f32 %v810, %v874
    %v939 = vadd.f32 %v811, %v875
    %v940 = vadd.f32 %v812, %v876
    %v941 = vadd.f32 %v813, %v877
    %v942 = vadd.f32 %v814, %v878
    %v943 = vadd.f32 %v815, %v879
    %v944 = vadd.f32 %v816, %v880
    %v945 = vadd.f32 %v817, %v881
    %v946 = vadd.f32 %v818, %v882
    %v947 = vadd.f32 %v819, %v883
    %v948 = vadd.f32 %v820, %v884
    %v949 = vadd.f32 %v821, %v885
    %v950 = vadd.f32 %v822, %v886
    %v951 = vadd.f32 %v823, %v887
    %v952 = vadd.f32 %v824, %v888
    %v953 = vadd.f32 %v825, %v889
    %v954 = vld [vmem:[#allocation7] sm:$0xff]
    %v955 = vld [vmem:[#allocation7 + $0x8] sm:$0xff]
    %v956 = vld [vmem:[#allocation7 + $0x10] sm:$0xff]
    %v957 = vld [vmem:[#allocation7 + $0x18] sm:$0xff]
    %v958 = vld [vmem:[#allocation7 + $0x20] sm:$0xff]
    %v959 = vld [vmem:[#allocation7 + $0x28] sm:$0xff]
    %v960 = vld [vmem:[#allocation7 + $0x30] sm:$0xff]
    %v961 = vld [vmem:[#allocation7 + $0x38] sm:$0xff]
    %v962 = vld [vmem:[#allocation7 + $0x40] sm:$0xff]
    %v963 = vld [vmem:[#allocation7 + $0x48] sm:$0xff]
    %v964 = vld [vmem:[#allocation7 + $0x50] sm:$0xff]
    %v965 = vld [vmem:[#allocation7 + $0x58] sm:$0xff]
    %v966 = vld [vmem:[#allocation7 + $0x60] sm:$0xff]
    %v967 = vld [vmem:[#allocation7 + $0x68] sm:$0xff]
    %v968 = vld [vmem:[#allocation7 + $0x70] sm:$0xff]
    %v969 = vld [vmem:[#allocation7 + $0x78] sm:$0xff]
    %v970 = vld [vmem:[#allocation7 + $0x80] sm:$0xff]
    %v971 = vld [vmem:[#allocation7 + $0x88] sm:$0xff]
    %v972 = vld [vmem:[#allocation7 + $0x90] sm:$0xff]
    %v973 = vld [vmem:[#allocation7 + $0x98] sm:$0xff]
    %v974 = vld [vmem:[#allocation7 + $0xa0] sm:$0xff]
    %v975 = vld [vmem:[#allocation7 + $0xa8] sm:$0xff]
    %v976 = vld [vmem:[#allocation7 + $0xb0] sm:$0xff]
    %v977 = vld [vmem:[#allocation7 + $0xb8] sm:$0xff]
    %v978 = vld [vmem:[#allocation7 + $0xc0] sm:$0xff]
    %v979 = vld [vmem:[#allocation7 + $0xc8] sm:$0xff]
    %v980 = vld [vmem:[#allocation7 + $0xd0] sm:$0xff]
    %v981 = vld [vmem:[#allocation7 + $0xd8] sm:$0xff]
    %v982 = vld [vmem:[#allocation7 + $0xe0] sm:$0xff]
    %v983 = vld [vmem:[#allocation7 + $0xe8] sm:$0xff]
    %v984 = vld [vmem:[#allocation7 + $0xf0] sm:$0xff]
    %v985 = vld [vmem:[#allocation7 + $0xf8] sm:$0xff]
    %986 = vmatprep.subr.mxu0 0.0
    %987 = vmatpush1.msra.mxu0 %v954
    %988 = vmatprep.subr.mxu0 0.0
    %989 = vmatpush1.msra.mxu0 %v955
    %990 = vmatprep.subr.mxu0 0.0
    %991 = vmatpush1.msra.mxu0 %v956
    %992 = vmatprep.subr.mxu0 0.0
    %993 = vmatpush1.msra.mxu0 %v957
    %994 = vmatprep.subr.mxu0 0.0
    %995 = vmatpush1.msra.mxu0 %v958
    %996 = vmatprep.subr.mxu0 0.0
    %997 = vmatpush1.msra.mxu0 %v959
    %998 = vmatprep.subr.mxu0 0.0
    %999 = vmatpush1.msra.mxu0 %v960
    %1000 = vmatprep.subr.mxu0 0.0
    %1001 = vmatpush1.msra.mxu0 %v961
    %1002 = vmatprep.subr.mxu0 0.0
    %1003 = vmatpush1.msra.mxu0 %v962
    %1004 = vmatprep.subr.mxu0 0.0
    %1005 = vmatpush1.msra.mxu0 %v963
    %1006 = vmatprep.subr.mxu0 0.0
    %1007 = vmatpush1.msra.mxu0 %v964
    %1008 = vmatprep.subr.mxu0 0.0
    %1009 = vmatpush1.msra.mxu0 %v965
    %1010 = vmatprep.subr.mxu0 0.0
    %1011 = vmatpush1.msra.mxu0 %v966
    %1012 = vmatprep.subr.mxu0 0.0
    %1013 = vmatpush1.msra.mxu0 %v967
    %1014 = vmatprep.subr.mxu0 0.0
    %1015 = vmatpush1.msra.mxu0 %v968
    %1016 = vmatprep.subr.mxu0 0.0
    %1017 = vmatpush1.msra.mxu0 %v969
    %1018 = vmatprep.subr.mxu0 0.0
    %1019 = vmatpush1.msra.mxu0 %v970
    %1020 = vmatprep.subr.mxu0 0.0
    %1021 = vmatpush1.msra.mxu0 %v971
    %1022 = vmatprep.subr.mxu0 0.0
    %1023 = vmatpush1.msra.mxu0 %v972
    %1024 = vmatprep.subr.mxu0 0.0
    %1025 = vmatpush1.msra.mxu0 %v973
    %1026 = vmatprep.subr.mxu0 0.0
    %1027 = vmatpush1.msra.mxu0 %v974
    %1028 = vmatprep.subr.mxu0 0.0
    %1029 = vmatpush1.msra.mxu0 %v975
    %1030 = vmatprep.subr.mxu0 0.0
    %1031 = vmatpush1.msra.mxu0 %v976
    %1032 = vmatprep.subr.mxu0 0.0
    %1033 = vmatpush1.msra.mxu0 %v977
    %1034 = vmatprep.subr.mxu0 0.0
    %1035 = vmatpush1.msra.mxu0 %v978
    %1036 = vmatprep.subr.mxu0 0.0
    %1037 = vmatpush1.msra.mxu0 %v979
    %1038 = vmatprep.subr.mxu0 0.0
    %1039 = vmatpush1.msra.mxu0 %v980
    %1040 = vmatprep.subr.mxu0 0.0
    %1041 = vmatpush1.msra.mxu0 %v981
    %1042 = vmatprep.subr.mxu0 0.0
    %1043 = vmatpush1.msra.mxu0 %v982
    %1044 = vmatprep.subr.mxu0 0.0
    %1045 = vmatpush1.msra.mxu0 %v983
    %1046 = vmatprep.subr.mxu0 0.0
    %1047 = vmatpush1.msra.mxu0 %v984
    %1048 = vmatprep.subr.mxu0 0.0
    %1049 = vmatpush1.msra.mxu0 %v985
    %1050 = vmatprep.mubr.f32.mxu0 %v891
    %1051 = vmatmul.mubr.f32.gmra.mrb[0].mxu0 %v890
    %v1052 = vpop.f32.mrb[0].mxu0
    %v1053 = vadd.f32 0.0, %v1052
    %v1054 = vpop.f32.mrb[0].mxu0
    %1055 = vmatprep.mubr.f32.mxu0 %v893
    %1056 = vmatmul.mubr.f32.gmra.mrb[0].mxu0 %v892
    %v1057 = vpop.f32.mrb[0].mxu0
    %v1058 = vadd.f32 0.0, %v1057
    %v1059 = vpop.f32.mrb[0].mxu0
    %1060 = vmatprep.mubr.f32.mxu0 %v895
    %1061 = vmatmul.mubr.f32.gmra.mrb[0].mxu0 %v894
    %v1062 = vpop.f32.mrb[0].mxu0
    %v1063 = vadd.f32 0.0, %v1062
    %v1064 = vpop.f32.mrb[0].mxu0
    %1065 = vmatprep.mubr.f32.mxu0 %v897
    %1066 = vmatmul.mubr.f32.gmra.mrb[0].mxu0 %v896
    %v1067 = vpop.f32.mrb[0].mxu0
    %v1068 = vadd.f32 0.0, %v1067
    %v1069 = vpop.f32.mrb[0].mxu0
    %1070 = vmatprep.mubr.f32.mxu0 %v899
    %1071 = vmatmul.mubr.f32.gmra.mrb[0].mxu0 %v898
    %v1072 = vpop.f32.mrb[0].mxu0
    %v1073 = vadd.f32 0.0, %v1072
    %v1074 = vpop.f32.mrb[0].mxu0
    %1075 = vmatprep.mubr.f32.mxu0 %v901
    %1076 = vmatmul.mubr.f32.gmra.mrb[0].mxu0 %v900
    %v1077 = vpop.f32.mrb[0].mxu0
    %v1078 = vadd.f32 0.0, %v1077
    %v1079 = vpop.f32.mrb[0].mxu0
    %1080 = vmatprep.mubr.f32.mxu0 %v903
    %1081 = vmatmul.mubr.f32.gmra.mrb[0].mxu0 %v902
    %v1082 = vpop.f32.mrb[0].mxu0
    %v1083 = vadd.f32 0.0, %v1082
    %v1084 = vpop.f32.mrb[0].mxu0
    %1085 = vmatprep.mubr.f32.mxu0 %v905
    %1086 = vmatmul.mubr.f32.gmra.mrb[0].mxu0 %v904
    %v1087 = vpop.f32.mrb[0].mxu0
    %v1088 = vadd.f32 0.0, %v1087
    %v1089 = vpop.f32.mrb[0].mxu0
    %1090 = vmatprep.mubr.f32.mxu0 %v907
    %1091 = vmatmul.mubr.f32.gmra.mrb[0].mxu0 %v906
    %v1092 = vpop.f32.mrb[0].mxu0
    %v1093 = vadd.f32 0.0, %v1092
    %v1094 = vpop.f32.mrb[0].mxu0
    %1095 = vmatprep.mubr.f32.mxu0 %v909
    %1096 = vmatmul.mubr.f32.gmra.mrb[0].mxu0 %v908
    %v1097 = vpop.f32.mrb[0].mxu0
    %v1098 = vadd.f32 0.0, %v1097
    %v1099 = vpop.f32.mrb[0].mxu0
    %1100 = vmatprep.mubr.f32.mxu0 %v911
    %1101 = vmatmul.mubr.f32.gmra.mrb[0].mxu0 %v910
    %v1102 = vpop.f32.mrb[0].mxu0
    %v1103 = vadd.f32 0.0, %v1102
    %v1104 = vpop.f32.mrb[0].mxu0
    %1105 = vmatprep.mubr.f32.mxu0 %v913
    %1106 = vmatmul.mubr.f32.gmra.mrb[0].mxu0 %v912
    %v1107 = vpop.f32.mrb[0].mxu0
    %v1108 = vadd.f32 0.0, %v1107
    %v1109 = vpop.f32.mrb[0].mxu0
    %1110 = vmatprep.mubr.f32.mxu0 %v915
    %1111 = vmatmul.mubr.f32.gmra.mrb[0].mxu0 %v914
    %v1112 = vpop.f32.mrb[0].mxu0
    %v1113 = vadd.f32 0.0, %v1112
    %v1114 = vpop.f32.mrb[0].mxu0
    %1115 = vmatprep.mubr.f32.mxu0 %v917
    %1116 = vmatmul.mubr.f32.gmra.mrb[0].mxu0 %v916
    %v1117 = vpop.f32.mrb[0].mxu0
    %v1118 = vadd.f32 0.0, %v1117
    %v1119 = vpop.f32.mrb[0].mxu0
    %1120 = vmatprep.mubr.f32.mxu0 %v919
    %1121 = vmatmul.mubr.f32.gmra.mrb[0].mxu0 %v918
    %v1122 = vpop.f32.mrb[0].mxu0
    %v1123 = vadd.f32 0.0, %v1122
    %v1124 = vpop.f32.mrb[0].mxu0
    %1125 = vmatprep.mubr.f32.mxu0 %v921
    %1126 = vmatmul.mubr.f32.gmra.mrb[0].mxu0 %v920
    %v1127 = vpop.f32.mrb[0].mxu0
    %v1128 = vadd.f32 0.0, %v1127
    %v1129 = vpop.f32.mrb[0].mxu0
    %1130 = vmatprep.mubr.f32.mxu0 %v923
    %1131 = vmatmul.mubr.f32.gmra.mrb[0].mxu0 %v922
    %v1132 = vpop.f32.mrb[0].mxu0
    %v1133 = vadd.f32 0.0, %v1132
    %v1134 = vpop.f32.mrb[0].mxu0
    %1135 = vmatprep.mubr.f32.mxu0 %v925
    %1136 = vmatmul.mubr.f32.gmra.mrb[0].mxu0 %v924
    %v1137 = vpop.f32.mrb[0].mxu0
    %v1138 = vadd.f32 0.0, %v1137
    %v1139 = vpop.f32.mrb[0].mxu0
    %1140 = vmatprep.mubr.f32.mxu0 %v927
    %1141 = vmatmul.mubr.f32.gmra.mrb[0].mxu0 %v926
    %v1142 = vpop.f32.mrb[0].mxu0
    %v1143 = vadd.f32 0.0, %v1142
    %v1144 = vpop.f32.mrb[0].mxu0
    %1145 = vmatprep.mubr.f32.mxu0 %v929
    %1146 = vmatmul.mubr.f32.gmra.mrb[0].mxu0 %v928
    %v1147 = vpop.f32.mrb[0].mxu0
    %v1148 = vadd.f32 0.0, %v1147
    %v1149 = vpop.f32.mrb[0].mxu0
    %1150 = vmatprep.mubr.f32.mxu0 %v931
    %1151 = vmatmul.mubr.f32.gmra.mrb[0].mxu0 %v930
    %v1152 = vpop.f32.mrb[0].mxu0
    %v1153 = vadd.f32 0.0, %v1152
    %v1154 = vpop.f32.mrb[0].mxu0
    %1155 = vmatprep.mubr.f32.mxu0 %v933
    %1156 = vmatmul.mubr.f32.gmra.mrb[0].mxu0 %v932
    %v1157 = vpop.f32.mrb[0].mxu0
    %v1158 = vadd.f32 0.0, %v1157
    %v1159 = vpop.f32.mrb[0].mxu0
    %1160 = vmatprep.mubr.f32.mxu0 %v935
    %1161 = vmatmul.mubr.f32.gmra.mrb[0].mxu0 %v934
    %v1162 = vpop.f32.mrb[0].mxu0
    %v1163 = vadd.f32 0.0, %v1162
    %v1164 = vpop.f32.mrb[0].mxu0
    %1165 = vmatprep.mubr.f32.mxu0 %v937
    %1166 = vmatmul.mubr.f32.gmra.mrb[0].mxu0 %v936
    %v1167 = vpop.f32.mrb[0].mxu0
    %v1168 = vadd.f32 0.0, %v1167
    %v1169 = vpop.f32.mrb[0].mxu0
    %1170 = vmatprep.mubr.f32.mxu0 %v939
    %1171 = vmatmul.mubr.f32.gmra.mrb[0].mxu0 %v938
    %v1172 = vpop.f32.mrb[0].mxu0
    %v1173 = vadd.f32 0.0, %v1172
    %v1174 = vpop.f32.mrb[0].mxu0
    %1175 = vmatprep.mubr.f32.mxu0 %v941
    %1176 = vmatmul.mubr.f32.gmra.mrb[0].mxu0 %v940
    %v1177 = vpop.f32.mrb[0].mxu0
    %v1178 = vadd.f32 0.0, %v1177
    %v1179 = vpop.f32.mrb[0].mxu0
    %1180 = vmatprep.mubr.f32.mxu0 %v943
    %1181 = vmatmul.mubr.f32.gmra.mrb[0].mxu0 %v942
    %v1182 = vpop.f32.mrb[0].mxu0
    %v1183 = vadd.f32 0.0, %v1182
    %v1184 = vpop.f32.mrb[0].mxu0
    %1185 = vmatprep.mubr.f32.mxu0 %v945
    %1186 = vmatmul.mubr.f32.gmra.mrb[0].mxu0 %v944
    %v1187 = vpop.f32.mrb[0].mxu0
    %v1188 = vadd.f32 0.0, %v1187
    %v1189 = vpop.f32.mrb[0].mxu0
    %1190 = vmatprep.mubr.f32.mxu0 %v947
    %1191 = vmatmul.mubr.f32.gmra.mrb[0].mxu0 %v946
    %v1192 = vpop.f32.mrb[0].mxu0
    %v1193 = vadd.f32 0.0, %v1192
    %v1194 = vpop.f32.mrb[0].mxu0
    %1195 = vmatprep.mubr.f32.mxu0 %v949
    %1196 = vmatmul.mubr.f32.gmra.mrb[0].mxu0 %v948
    %v1197 = vpop.f32.mrb[0].mxu0
    %v1198 = vadd.f32 0.0, %v1197
    %v1199 = vpop.f32.mrb[0].mxu0
    %1200 = vmatprep.mubr.f32.mxu0 %v951
    %1201 = vmatmul.mubr.f32.gmra.mrb[0].mxu0 %v950
    %v1202 = vpop.f32.mrb[0].mxu0
    %v1203 = vadd.f32 0.0, %v1202
    %v1204 = vpop.f32.mrb[0].mxu0
    %1205 = vmatprep.mubr.f32.mxu0 %v953
    %1206 = vmatmul.mubr.f32.gmra.mrb[0].mxu0 %v952
    %v1207 = vpop.f32.mrb[0].mxu0
    %v1208 = vadd.f32 0.0, %v1207
    %v1209 = vpop.f32.mrb[0].mxu0
    %1210 = vdwg.mxu0
    %v1211 = vmax.f32 %v1053, 1e-10
    %v1212 = vmax.f32 %v1058, 1e-10
    %v1213 = vmax.f32 %v1063, 1e-10
    %v1214 = vmax.f32 %v1068, 1e-10
    %v1215 = vmax.f32 %v1073, 1e-10
    %v1216 = vmax.f32 %v1078, 1e-10
    %v1217 = vmax.f32 %v1083, 1e-10
    %v1218 = vmax.f32 %v1088, 1e-10
    %v1219 = vmax.f32 %v1093, 1e-10
    %v1220 = vmax.f32 %v1098, 1e-10
    %v1221 = vmax.f32 %v1103, 1e-10
    %v1222 = vmax.f32 %v1108, 1e-10
    %v1223 = vmax.f32 %v1113, 1e-10
    %v1224 = vmax.f32 %v1118, 1e-10
    %v1225 = vmax.f32 %v1123, 1e-10
    %v1226 = vmax.f32 %v1128, 1e-10
    %v1227 = vmax.f32 %v1133, 1e-10
    %v1228 = vmax.f32 %v1138, 1e-10
    %v1229 = vmax.f32 %v1143, 1e-10
    %v1230 = vmax.f32 %v1148, 1e-10
    %v1231 = vmax.f32 %v1153, 1e-10
    %v1232 = vmax.f32 %v1158, 1e-10
    %v1233 = vmax.f32 %v1163, 1e-10
    %v1234 = vmax.f32 %v1168, 1e-10
    %v1235 = vmax.f32 %v1173, 1e-10
    %v1236 = vmax.f32 %v1178, 1e-10
    %v1237 = vmax.f32 %v1183, 1e-10
    %v1238 = vmax.f32 %v1188, 1e-10
    %v1239 = vmax.f32 %v1193, 1e-10
    %v1240 = vmax.f32 %v1198, 1e-10
    %v1241 = vmax.f32 %v1203, 1e-10
    %v1242 = vmax.f32 %v1208, 1e-10
    %v1243 = vlog2.pop %v1211
    %v1244 = vmul.f32 %v1243, 0.6931472
    %v1245 = vlog2.pop %v1212
    %v1246 = vmul.f32 %v1245, 0.6931472
    %v1247 = vlog2.pop %v1213
    %v1248 = vmul.f32 %v1247, 0.6931472
    %v1249 = vlog2.pop %v1214
    %v1250 = vmul.f32 %v1249, 0.6931472
    %v1251 = vlog2.pop %v1215
    %v1252 = vmul.f32 %v1251, 0.6931472
    %v1253 = vlog2.pop %v1216
    %v1254 = vmul.f32 %v1253, 0.6931472
    %v1255 = vlog2.pop %v1217
    %v1256 = vmul.f32 %v1255, 0.6931472
    %v1257 = vlog2.pop %v1218
    %v1258 = vmul.f32 %v1257, 0.6931472
    %v1259 = vlog2.pop %v1219
    %v1260 = vmul.f32 %v1259, 0.6931472
    %v1261 = vlog2.pop %v1220
    %v1262 = vmul.f32 %v1261, 0.6931472
    %v1263 = vlog2.pop %v1221
    %v1264 = vmul.f32 %v1263, 0.6931472
    %v1265 = vlog2.pop %v1222
    %v1266 = vmul.f32 %v1265, 0.6931472
    %v1267 = vlog2.pop %v1223
    %v1268 = vmul.f32 %v1267, 0.6931472
    %v1269 = vlog2.pop %v1224
    %v1270 = vmul.f32 %v1269, 0.6931472
    %v1271 = vlog2.pop %v1225
    %v1272 = vmul.f32 %v1271, 0.6931472
    %v1273 = vlog2.pop %v1226
    %v1274 = vmul.f32 %v1273, 0.6931472
    %v1275 = vlog2.pop %v1227
    %v1276 = vmul.f32 %v1275, 0.6931472
    %v1277 = vlog2.pop %v1228
    %v1278 = vmul.f32 %v1277, 0.6931472
    %v1279 = vlog2.pop %v1229
    %v1280 = vmul.f32 %v1279, 0.6931472
    %v1281 = vlog2.pop %v1230
    %v1282 = vmul.f32 %v1281, 0.6931472
    %v1283 = vlog2.pop %v1231
    %v1284 = vmul.f32 %v1283, 0.6931472
    %v1285 = vlog2.pop %v1232
    %v1286 = vmul.f32 %v1285, 0.6931472
    %v1287 = vlog2.pop %v1233
    %v1288 = vmul.f32 %v1287, 0.6931472
    %v1289 = vlog2.pop %v1234
    %v1290 = vmul.f32 %v1289, 0.6931472
    %v1291 = vlog2.pop %v1235
    %v1292 = vmul.f32 %v1291, 0.6931472
    %v1293 = vlog2.pop %v1236
    %v1294 = vmul.f32 %v1293, 0.6931472
    %v1295 = vlog2.pop %v1237
    %v1296 = vmul.f32 %v1295, 0.6931472
    %v1297 = vlog2.pop %v1238
    %v1298 = vmul.f32 %v1297, 0.6931472
    %v1299 = vlog2.pop %v1239
    %v1300 = vmul.f32 %v1299, 0.6931472
    %v1301 = vlog2.pop %v1240
    %v1302 = vmul.f32 %v1301, 0.6931472
    %v1303 = vlog2.pop %v1241
    %v1304 = vmul.f32 %v1303, 0.6931472
    %v1305 = vlog2.pop %v1242
    %v1306 = vmul.f32 %v1305, 0.6931472
    %v1307 = vmul.f32 %v1244, 0.4342945
    %v1308 = vmul.f32 %v1246, 0.4342945
    %v1309 = vmul.f32 %v1248, 0.4342945
    %v1310 = vmul.f32 %v1250, 0.4342945
    %v1311 = vmul.f32 %v1252, 0.4342945
    %v1312 = vmul.f32 %v1254, 0.4342945
    %v1313 = vmul.f32 %v1256, 0.4342945
    %v1314 = vmul.f32 %v1258, 0.4342945
    %v1315 = vmul.f32 %v1260, 0.4342945
    %v1316 = vmul.f32 %v1262, 0.4342945
    %v1317 = vmul.f32 %v1264, 0.4342945
    %v1318 = vmul.f32 %v1266, 0.4342945
    %v1319 = vmul.f32 %v1268, 0.4342945
    %v1320 = vmul.f32 %v1270, 0.4342945
    %v1321 = vmul.f32 %v1272, 0.4342945
    %v1322 = vmul.f32 %v1274, 0.4342945
    %v1323 = vmul.f32 %v1276, 0.4342945
    %v1324 = vmul.f32 %v1278, 0.4342945
    %v1325 = vmul.f32 %v1280, 0.4342945
    %v1326 = vmul.f32 %v1282, 0.4342945
    %v1327 = vmul.f32 %v1284, 0.4342945
    %v1328 = vmul.f32 %v1286, 0.4342945
    %v1329 = vmul.f32 %v1288, 0.4342945
    %v1330 = vmul.f32 %v1290, 0.4342945
    %v1331 = vmul.f32 %v1292, 0.4342945
    %v1332 = vmul.f32 %v1294, 0.4342945
    %v1333 = vmul.f32 %v1296, 0.4342945
    %v1334 = vmul.f32 %v1298, 0.4342945
    %v1335 = vmul.f32 %v1300, 0.4342945
    %v1336 = vmul.f32 %v1302, 0.4342945
    %v1337 = vmul.f32 %v1304, 0.4342945
    %v1338 = vmul.f32 %v1306, 0.4342945
    %v1339 = vmul.f32 %v1307, 10.0
    %v1340 = vmul.f32 %v1308, 10.0
    %v1341 = vmul.f32 %v1309, 10.0
    %v1342 = vmul.f32 %v1310, 10.0
    %v1343 = vmul.f32 %v1311, 10.0
    %v1344 = vmul.f32 %v1312, 10.0
    %v1345 = vmul.f32 %v1313, 10.0
    %v1346 = vmul.f32 %v1314, 10.0
    %v1347 = vmul.f32 %v1315, 10.0
    %v1348 = vmul.f32 %v1316, 10.0
    %v1349 = vmul.f32 %v1317, 10.0
    %v1350 = vmul.f32 %v1318, 10.0
    %v1351 = vmul.f32 %v1319, 10.0
    %v1352 = vmul.f32 %v1320, 10.0
    %v1353 = vmul.f32 %v1321, 10.0
    %v1354 = vmul.f32 %v1322, 10.0
    %v1355 = vmul.f32 %v1323, 10.0
    %v1356 = vmul.f32 %v1324, 10.0
    %v1357 = vmul.f32 %v1325, 10.0
    %v1358 = vmul.f32 %v1326, 10.0
    %v1359 = vmul.f32 %v1327, 10.0
    %v1360 = vmul.f32 %v1328, 10.0
    %v1361 = vmul.f32 %v1329, 10.0
    %v1362 = vmul.f32 %v1330, 10.0
    %v1363 = vmul.f32 %v1331, 10.0
    %v1364 = vmul.f32 %v1332, 10.0
    %v1365 = vmul.f32 %v1333, 10.0
    %v1366 = vmul.f32 %v1334, 10.0
    %v1367 = vmul.f32 %v1335, 10.0
    %v1368 = vmul.f32 %v1336, 10.0
    %v1369 = vmul.f32 %v1337, 10.0
    %v1370 = vmul.f32 %v1338, 10.0
    %1371 = vst [vmem:[#allocation8] sm:$0xff] %v1339
    %1372 = vst [vmem:[#allocation8 + $0x8] sm:$0xff] %v1340
    %1373 = vst [vmem:[#allocation8 + $0x10] sm:$0xff] %v1341
    %1374 = vst [vmem:[#allocation8 + $0x18] sm:$0xff] %v1342
    %1375 = vst [vmem:[#allocation8 + $0x20] sm:$0xff] %v1343
    %1376 = vst [vmem:[#allocation8 + $0x28] sm:$0xff] %v1344
    %1377 = vst [vmem:[#allocation8 + $0x30] sm:$0xff] %v1345
    %1378 = vst [vmem:[#allocation8 + $0x38] sm:$0xff] %v1346
    %1379 = vst [vmem:[#allocation8 + $0x40] sm:$0xff] %v1347
    %1380 = vst [vmem:[#allocation8 + $0x48] sm:$0xff] %v1348
    %1381 = vst [vmem:[#allocation8 + $0x50] sm:$0xff] %v1349
    %1382 = vst [vmem:[#allocation8 + $0x58] sm:$0xff] %v1350
    %1383 = vst [vmem:[#allocation8 + $0x60] sm:$0xff] %v1351
    %1384 = vst [vmem:[#allocation8 + $0x68] sm:$0xff] %v1352
    %1385 = vst [vmem:[#allocation8 + $0x70] sm:$0xff] %v1353
    %1386 = vst [vmem:[#allocation8 + $0x78] sm:$0xff] %v1354
    %1387 = vst [vmem:[#allocation8 + $0x80] sm:$0xff] %v1355
    %1388 = vst [vmem:[#allocation8 + $0x88] sm:$0xff] %v1356
    %1389 = vst [vmem:[#allocation8 + $0x90] sm:$0xff] %v1357
    %1390 = vst [vmem:[#allocation8 + $0x98] sm:$0xff] %v1358
    %1391 = vst [vmem:[#allocation8 + $0xa0] sm:$0xff] %v1359
    %1392 = vst [vmem:[#allocation8 + $0xa8] sm:$0xff] %v1360
    %1393 = vst [vmem:[#allocation8 + $0xb0] sm:$0xff] %v1361
    %1394 = vst [vmem:[#allocation8 + $0xb8] sm:$0xff] %v1362
    %1395 = vst [vmem:[#allocation8 + $0xc0] sm:$0xff] %v1363
    %1396 = vst [vmem:[#allocation8 + $0xc8] sm:$0xff] %v1364
    %1397 = vst [vmem:[#allocation8 + $0xd0] sm:$0xff] %v1365
    %1398 = vst [vmem:[#allocation8 + $0xd8] sm:$0xff] %v1366
    %1399 = vst [vmem:[#allocation8 + $0xe0] sm:$0xff] %v1367
    %1400 = vst [vmem:[#allocation8 + $0xe8] sm:$0xff] %v1368
    %1401 = vst [vmem:[#allocation8 + $0xf0] sm:$0xff] %v1369
    %1402 = vst [vmem:[#allocation8 + $0xf8] sm:$0xff] %v1370
    // Predicated region
    $region26: #{tpu_custom_call.1} parent=1 // pred_check
      _
    $region27: #{tpu_custom_call.1} parent=1 // pred_check_branch
      %1404 = sbr.rel (0) target = $region29
    $region28: #{tpu_custom_call.1} parent=1 // pred_region
      %s1406 = ssub.s32 4096, 4096
      %1407 = vsyncadd [#allocation4], %s1406
      %s1408 = sshll.u32 [#allocation8], 4
      %s1409 = int_to_ptr.vmem [resolvable:$true] %s1408
      %1414 = dma.vmem_to_hbm [thread:$0]  %s1409, 4096, %s3, [#allocation4], 128, 128, 8
    $region29: #{tpu_custom_call.1} parent=1 // pred_fallthru
      _
    // Predicated region
    $region30: #{tpu_custom_call.1} parent=1 // pred_check
      _
    $region31: #{tpu_custom_call.1} parent=1 // pred_check_branch
      %1416 = sbr.rel (0) target = $region33
    $region32: #{tpu_custom_call.1} parent=1 // pred_region
      %1417 = dma.done [#allocation4], 4096
    $region33: #{tpu_custom_call.1} parent=1 // pred_fallthru
      _
    %1418 = vsyncpa [#allocation3], 1
    %1419 = vsyncpa [#allocation6], 1
    %1420 = vsyncpa [#allocation4], 1

</llo_original>
